<compile_context>
chip_gen: v7x
topology: tpu7x:2x2x1
jax: 0.10.0
libtpu: 0.0.40
codegen_flags: <defaults>
</compile_context>

<pallas_src>
import functools
import numpy as np
import jax
import jax.numpy as jnp
from jax import lax
from jax.experimental import pallas as pl
from jax.experimental.pallas import tpu as pltpu


# ---------------------------------------------------------------------------
# Pallas kernel: TB batch elements (RT = TB * num_seqs * seq_len rows) per step
# ---------------------------------------------------------------------------
def _bottleneck_kernel(embed_scale, inv_levels_m1, inv_num_seqs, rows_per_batch,
                       idx_ref, bp_ref, pos_ref, ltri_ref, e3_ref,
                       w1c_ref, b1c_ref, w2c_ref, b2c_ref,
                       w1v_ref, b1v_ref, w2v_ref, b2v_ref,
                       out_ref):
    f32 = jnp.float32
    bf16 = jnp.bfloat16
    dot = lambda a, b: jnp.dot(a, b, preferred_element_type=f32)

    idx = idx_ref[0]                                   # (RT, 2) int32
    cidx = idx[:, 0:1]                                 # class indexes (RT, 1)
    vidx = idx[:, 1:2]                                 # value indexes (RT, 1)
    RT = idx.shape[0]
    TR = rows_per_batch                                # rows per batch element
    TBp = bp_ref.shape[1]                              # padded batch tile
    TB = out_ref.shape[1]                              # real batch tile
    N = e3_ref.shape[0]
    D = pos_ref.shape[1]
    M = w2v_ref.shape[1]

    # --- fused embedding gather: one (RT,N)@(N,3D) MXU matmul ----------------
    lane_n = lax.broadcasted_iota(jnp.int32, (RT, N), 1)
    onehot_bool = cidx == lane_n
    onehot_c = onehot_bool.astype(bf16)                # exact 0/1
    gath = dot(onehot_c, e3_ref[...])                  # (RT, 3D) f32
    present = gath[:, 0:D]                             # class_present_embed
    sel_val = (vidx.astype(f32) * inv_levels_m1) ** 2  # selected_values ** 2
    val_emb = gath[:, D:2 * D] * sel_val               # class_value_embed
    query = gath[:, 2 * D:]                            # class_query_embed

    # --- per-row broadcast of [base | probs]: one (RT,TBp) selection matmul --
    r_io = lax.broadcasted_iota(jnp.int32, (RT, TBp), 0)
    t_io = lax.broadcasted_iota(jnp.int32, (RT, TBp), 1) * TR
    sel_rows = ((r_io >= t_io) & (r_io < t_io + TR)).astype(bf16)   # row -> batch
    bp_rows = dot(sel_rows, bp_ref[0].astype(bf16))    # (RT, D+N) f32
    base_rows = bp_rows[:, 0:D]
    probs_rows = bp_rows[:, D:]

    # --- fused per-segment cumsums: one (RT,RT)@(RT,2D+N) MXU matmul ---------
    rhs = jnp.concatenate(
        [jnp.concatenate([present, val_emb], axis=1).astype(bf16), onehot_c],
        axis=1)                                        # (RT, 2D+N) bf16, one cast
    cum = dot(ltri_ref[...], rhs)                      # (RT, 2D+N) f32
    present_cum = cum[:, 0:D]                          # inclusive cumsum
    val_cum = cum[:, D:2 * D] - val_emb                # exclusive = incl - element
    mask = (cum[:, 2 * D:] - onehot_bool.astype(f32)) > 0.5   # classes seen earlier

    common = val_cum + present_cum + pos_ref[...]
    class_in = (base_rows + embed_scale * (common - present)).astype(bf16)
    value_in = (base_rows + embed_scale * (common + query)).astype(bf16)

    # --- the two 1-hidden-layer MLPs (bf16 operands, f32 accumulation) -------
    hc = jnp.maximum(dot(class_in, w1c_ref[...]) + b1c_ref[...], 0.0)
    logits_c = dot(hc.astype(bf16), w2c_ref[...]) + b2c_ref[...]     # (RT, N) f32
    hv = jnp.maximum(dot(value_in, w1v_ref[...]) + b1v_ref[...], 0.0)
    logits_v = dot(hv.astype(bf16), w2v_ref[...]) + b2v_ref[...]     # (RT, M) f32

    logits_c = jnp.where(mask, jnp.float32(-1e20), logits_c)

    # --- fused log-softmax + probs-weighted / gathered reductions ------------
    s_c = logits_c - jnp.max(logits_c, axis=-1, keepdims=True)
    lse_c = jnp.log(jnp.sum(jnp.exp(s_c), axis=-1, keepdims=True))
    p_masked = jnp.where(mask, 0.0, probs_rows)
    inv = pl.reciprocal(jnp.sum(p_masked, axis=-1, keepdims=True), approx=True)
    class_all = inv * jnp.sum(p_masked * s_c, axis=-1, keepdims=True) - lse_c

    s_v = logits_v - jnp.max(logits_v, axis=-1, keepdims=True)
    lse_v = jnp.log(jnp.sum(jnp.exp(s_v), axis=-1, keepdims=True))
    lane_m = lax.broadcasted_iota(jnp.int32, (RT, M), 1)
    value_all = (jnp.sum(jnp.where(vidx == lane_m, s_v, 0.0),
                         axis=-1, keepdims=True) - lse_v)

    # --- per-batch sums over (num_seqs, seq_len) straight into a lane-dense
    #     (TB, 128) tile: lane 0 = class logprob, lane 1 = value logprob -------
    lane = lax.broadcasted_iota(jnp.int32, (RT, 128), 1)
    packed = jnp.where(lane == 0, class_all,
                       jnp.where(lane == 1, value_all, 0.0))         # (RT, 128) f32
    tt_io = lax.broadcasted_iota(jnp.int32, (TB, RT), 0) * TR
    rr_io = lax.broadcasted_iota(jnp.int32, (TB, RT), 1)
    sel_t = ((rr_io >= tt_io) & (rr_io < tt_io + TR)).astype(f32)    # batch -> rows
    out_ref[0] = dot(sel_t, packed) * inv_num_seqs


# ---------------------------------------------------------------------------
# Wrapper: batch grouping / padding, parameter plumbing, pallas_call
# ---------------------------------------------------------------------------
def bottleneck_predictor_pallas(probs, class_indexes, value_indexes,
                                base_predictor, params, *,
                                num_discretization_levels):
    # TODO(synk): num_hidden_layers > 1 (extra LayerNorm+Linear+ReLU blocks) and the
    # probs=None / training-time gather branch are not implemented; this is the eval
    # forward with probs provided and one hidden layer per predictor MLP.
    B, S, K = class_indexes.shape
    N, D = params["e_present"].shape
    H = params["w1c"].shape[1]
    M = params["w2v"].shape[1]
    TR = S * K                                   # rows per batch element
    assert TR % 8 == 0, "num_seqs * seq_len must be a multiple of 8 (sublane tiling)"
    embed_scale = float(D) ** 0.5
    inv_levels_m1 = 1.0 / (num_discretization_levels - 1)
    f32, bf16 = jnp.float32, jnp.bfloat16

    # --- batch grouping: aim for ~256 MXU rows per grid step, keep >=2 steps ---
    TB = max(1, min(B, max(1, 256 // TR)))
    if B >= 2:
        TB = min(TB, (B + 1) // 2)               # >=2 parallel steps (v7x dual TC)
    G = -(-B // TB)
    Bpad = G * TB
    RT = TB * TR                                 # rows per grid step
    TBp = -(-TB // 8) * 8                        # pad broadcast-matmul contraction

    # --- per-step inputs: packed indexes, packed [base | probs] ---------------
    idx = jnp.stack([class_indexes.reshape(B, TR).astype(jnp.int32),
                     value_indexes.reshape(B, TR).astype(jnp.int32)], axis=-1)
    bp = jnp.concatenate([base_predictor.astype(f32).reshape(B, D),
                          probs.astype(f32).reshape(B, N)], axis=1)
    if Bpad > B:
        pad = Bpad - B
        idx = jnp.concatenate([idx, jnp.zeros((pad, TR, 2), jnp.int32)], axis=0)
        bp_pad = jnp.concatenate([jnp.zeros((pad, D), f32),
                                  jnp.full((pad, N), 1.0 / N, f32)], axis=1)
        bp = jnp.concatenate([bp, bp_pad], axis=0)
    idx = idx.reshape(G, RT, 2)
    bp = bp.reshape(G, TB, D + N)
    if TBp > TB:
        bp = jnp.concatenate([bp, jnp.zeros((G, TBp - TB, D + N), f32)], axis=1)

    # --- resident operands (constant index_map -> fetched once) ---------------
    pos_tile = jnp.tile(params["pos"].astype(f32), (S * TB, 1))        # (RT, D)
    r = np.arange(RT)
    seg = r // K
    ltri = jnp.asarray(((seg[:, None] == seg[None, :]) &
                        (r[None, :] <= r[:, None])).astype(np.float32), dtype=bf16)
    e3 = jnp.concatenate([params["e_present"], params["e_value"],
                          params["e_query"]], axis=1).astype(bf16)     # (N, 3D)
    w1c = params["w1c"].astype(bf16); b1c = params["b1c"].astype(f32)
    w2c = params["w2c"].astype(bf16); b2c = params["b2c"].astype(f32)
    w1v = params["w1v"].astype(bf16); b1v = params["b1v"].astype(f32)
    w2v = params["w2v"].astype(bf16); b2v = params["b2v"].astype(f32)

    def resident(shape):
        n = len(shape)
        # TODO(synk): pipeline_mode=pl.Buffered(1) would halve the resident VMEM
        # footprint for big models on v7x; left at default buffering for portability.
        return pl.BlockSpec(shape, lambda g, n=n: (0,) * n)

    in_specs = [
        pl.BlockSpec((1, RT, 2), lambda g: (g, 0, 0)),        # packed class/value idx
        pl.BlockSpec((1, TBp, D + N), lambda g: (g, 0, 0)),   # packed [base | probs]
        resident((RT, D)),            # position embedding (tiled over seqs & batches)
        resident((RT, RT)),           # block-diag lower-triangular cumsum operator
        resident((N, 3 * D)),         # [present | value | query] embedding tables
        resident((D, H)), resident((1, H)), resident((H, N)), resident((1, N)),
        resident((D, H)), resident((1, H)), resident((H, M)), resident((1, M)),
    ]
    out_specs = pl.BlockSpec((1, TB, 128), lambda g: (g, 0, 0))
    out_shape = jax.ShapeDtypeStruct((G, TB, 128), f32)

    # --- advisory cost estimate so XLA can overlap the custom call -------------
    residents = (pos_tile, ltri, e3, w1c, b1c, w2c, b2c, w1v, b1v, w2v, b2v)
    resident_bytes = int(sum(int(a.size) * a.dtype.itemsize for a in residents))
    flops_step = (2 * RT * (N * 3 * D + TBp * (D + N) + RT * (2 * D + N)
                            + 2 * D * H + H * N + H * M) + 2 * TB * RT * 128)
    transc_step = RT * (N + M + 3)
    step_bytes = RT * 2 * 4 + TBp * (D + N) * 4 + TB * 128 * 4
    cost = pl.CostEstimate(flops=int(G * flops_step),
                           transcendentals=int(G * transc_step),
                           bytes_accessed=int(resident_bytes + G * step_bytes))

    kernel = functools.partial(_bottleneck_kernel,
                               embed_scale, inv_levels_m1, 1.0 / S, TR)

    out = pl.pallas_call(
        kernel,
        grid=(G,),
        in_specs=in_specs,
        out_specs=out_specs,
        out_shape=out_shape,
        cost_estimate=cost,
        compiler_params=pltpu.CompilerParams(
            dimension_semantics=("parallel",),
            vmem_limit_bytes=32 * 1024 * 1024),
    )(idx, bp, pos_tile, ltri, e3,
      w1c, b1c, w2c, b2c, w1v, b1v, w2v, b2v)

    out = out.reshape(Bpad, 128)
    return out[:B, 0], out[:B, 1]


# ---------------------------------------------------------------------------
# Pure-numpy reference (mirrors the PyTorch forward, eval / probs path, f32)
# ---------------------------------------------------------------------------
def reference_forward(probs, class_idx, value_idx, base_pred, params,
                      num_discretization_levels):
    ep, ev, eq, pos = (np.asarray(params[k]) for k in
                       ("e_present", "e_value", "e_query", "pos"))
    w1c, b1c, w2c, b2c = (np.asarray(params[k]) for k in ("w1c", "b1c", "w2c", "b2c"))
    w1v, b1v, w2v, b2v = (np.asarray(params[k]) for k in ("w1v", "b1v", "w2v", "b2v"))
    probs, base_pred = np.asarray(probs), np.asarray(base_pred)
    class_idx, value_idx = np.asarray(class_idx), np.asarray(value_idx)
    B, S, K = class_idx.shape
    D = ep.shape[1]
    emb_scale = D ** 0.5

    cp = ep[class_idx]                                  # (B,S,K,D)
    cp_cum = np.cumsum(cp, axis=-2)
    sel = (value_idx.astype(np.float32) * (1.0 / (num_discretization_levels - 1))) ** 2
    cv = ev[class_idx] * sel[..., None]
    cv_cum = np.cumsum(cv, axis=-2) - cv
    cq = eq[class_idx]
    common = cv_cum + cp_cum + pos
    base = base_pred[:, None, None, :]
    class_in = base + emb_scale * (common - cp)
    value_in = base + emb_scale * (common + cq)

    def mlp(x, w1, b1, w2, b2):
        h = np.maximum(x @ w1 + b1, 0.0)
        return h @ w2 + b2

    logits_c = mlp(class_in, w1c, b1c, w2c, b2c)        # (B,S,K,N)
    logits_v = mlp(value_in, w1v, b1v, w2v, b2v)        # (B,S,K,M)

    counts = np.zeros_like(logits_c)
    np.put_along_axis(counts, class_idx[..., None], 1.0, axis=-1)
    mask = (np.cumsum(counts, axis=-2) - counts) != 0
    logits_c = np.where(mask, -1e20, logits_c)

    def logsm(x):
        m = x.max(-1, keepdims=True)
        s = x - m
        return s - np.log(np.exp(s).sum(-1, keepdims=True))

    lp_c, lp_v = logsm(logits_c), logsm(logits_v)
    p = np.broadcast_to(probs[:, None, None, :], mask.shape).copy()
    p[mask] = 0.0
    p = p / p.sum(-1, keepdims=True)
    lp_c_z = np.where(mask, 0.0, lp_c)
    class_all = (p * lp_c_z).sum(-1)
    value_all = np.take_along_axis(lp_v, value_idx[..., None], axis=-1)[..., 0]
    return class_all.sum((-2, -1)) / S, value_all.sum((-2, -1)) / S


# ---------------------------------------------------------------------------
if __name__ == "__main__":
    # small but tile-friendly shapes; B=5 exercises batch grouping + padding
    B, S, K = 5, 2, 8                 # batch, num_seqs, seq_len
    N, D, M, H = 128, 128, 128, 128   # classes, predictor_dim, levels, hidden

    key = jax.random.PRNGKey(0)
    ks = jax.random.split(key, 20)
    scale = 1.0 / (D ** 0.5)

    params = {
        "e_present": jax.random.normal(ks[0], (N, D), jnp.float32) * scale,
        "e_value":   jax.random.normal(ks[1], (N, D), jnp.float32) * scale,
        "e_query":   jax.random.normal(ks[2], (N, D), jnp.float32) * scale,
        "pos":       jax.random.normal(ks[3], (K, D), jnp.float32) * scale,
        "w1c": jax.random.normal(ks[4], (D, H), jnp.float32) * (1.0 / D ** 0.5),
        "b1c": jax.random.normal(ks[5], (1, H), jnp.float32) * 0.01,
        "w2c": jax.random.normal(ks[6], (H, N), jnp.float32) * (1.0 / H ** 0.5),
        "b2c": jax.random.normal(ks[7], (1, N), jnp.float32) * 0.01,
        "w1v": jax.random.normal(ks[8], (D, H), jnp.float32) * (1.0 / D ** 0.5),
        "b1v": jax.random.normal(ks[9], (1, H), jnp.float32) * 0.01,
        "w2v": jax.random.normal(ks[10], (H, M), jnp.float32) * (1.0 / H ** 0.5),
        "b2v": jax.random.normal(ks[11], (1, M), jnp.float32) * 0.01,
    }

    class_indexes = jax.random.randint(ks[12], (B, S, K), 0, N, dtype=jnp.int32)
    value_indexes = jax.random.randint(ks[13], (B, S, K), 0, M, dtype=jnp.int32)
    base_predictor = jax.random.normal(ks[14], (B, D), jnp.float32)
    probs = jax.nn.softmax(jax.random.normal(ks[15], (B, N), jnp.float32), axis=-1)

    class_lp, value_lp = bottleneck_predictor_pallas(
        probs, class_indexes, value_indexes, base_predictor, params,
        num_discretization_levels=M)
    jax.block_until_ready((class_lp, value_lp))

    ref_c, ref_v = reference_forward(probs, class_indexes, value_indexes,
                                     base_predictor, params,
                                     num_discretization_levels=M)
    # bf16 MXU operands with f32 accumulation vs f32 numpy reference
    np.testing.assert_allclose(np.asarray(class_lp), ref_c, rtol=2e-2, atol=5e-1)
    np.testing.assert_allclose(np.asarray(value_lp), ref_v, rtol=2e-2, atol=5e-1)
    print("KERNEL_OK")
</pallas_src>

<mosaic_0001>
module attributes {stable_mosaic.version = 11 : i64} {
  func.func @_bottleneck_kernel(%arg0: i32, %arg1: memref<1x48x2xi32, #tpu.memory_space<vmem>>, %arg2: memref<1x8x256xf32, #tpu.memory_space<vmem>>, %arg3: memref<48x128xf32, #tpu.memory_space<vmem>>, %arg4: memref<48x48xbf16, #tpu.memory_space<vmem>>, %arg5: memref<128x384xbf16, #tpu.memory_space<vmem>>, %arg6: memref<128x128xbf16, #tpu.memory_space<vmem>>, %arg7: memref<1x128xf32, #tpu.memory_space<vmem>>, %arg8: memref<128x128xbf16, #tpu.memory_space<vmem>>, %arg9: memref<1x128xf32, #tpu.memory_space<vmem>>, %arg10: memref<128x128xbf16, #tpu.memory_space<vmem>>, %arg11: memref<1x128xf32, #tpu.memory_space<vmem>>, %arg12: memref<128x128xbf16, #tpu.memory_space<vmem>>, %arg13: memref<1x128xf32, #tpu.memory_space<vmem>>, %arg14: memref<1x3x128xf32, #tpu.memory_space<vmem>>) attributes {dimension_semantics = [#tpu.dimension_semantics<parallel>], iteration_bounds = array<i64: 2>, scalar_prefetch = 0 : i64, scratch_operands = 0 : i64, tpu.core_type = #tpu.core_type<tc>, window_params = [{transform_indices = @transform_0, window_bounds = array<i64: 1, 48, 2>}, {transform_indices = @transform_1, window_bounds = array<i64: 1, 8, 256>}, {pipeline_mode = #tpu.pipeline_mode<synchronous>, transform_indices = @transform_2, window_bounds = array<i64: 48, 128>}, {pipeline_mode = #tpu.pipeline_mode<synchronous>, transform_indices = @transform_3, window_bounds = array<i64: 48, 48>}, {pipeline_mode = #tpu.pipeline_mode<synchronous>, transform_indices = @transform_4, window_bounds = array<i64: 128, 384>}, {pipeline_mode = #tpu.pipeline_mode<synchronous>, transform_indices = @transform_5, window_bounds = array<i64: 128, 128>}, {pipeline_mode = #tpu.pipeline_mode<synchronous>, transform_indices = @transform_6, window_bounds = array<i64: 1, 128>}, {pipeline_mode = #tpu.pipeline_mode<synchronous>, transform_indices = @transform_7, window_bounds = array<i64: 128, 128>}, {pipeline_mode = #tpu.pipeline_mode<synchronous>, transform_indices = @transform_8, window_bounds = array<i64: 1, 128>}, {pipeline_mode = #tpu.pipeline_mode<synchronous>, transform_indices = @transform_9, window_bounds = array<i64: 128, 128>}, {pipeline_mode = #tpu.pipeline_mode<synchronous>, transform_indices = @transform_10, window_bounds = array<i64: 1, 128>}, {pipeline_mode = #tpu.pipeline_mode<synchronous>, transform_indices = @transform_11, window_bounds = array<i64: 128, 128>}, {pipeline_mode = #tpu.pipeline_mode<synchronous>, transform_indices = @transform_12, window_bounds = array<i64: 1, 128>}, {transform_indices = @transform_13, window_bounds = array<i64: 1, 3, 128>}]} {
    %c0 = arith.constant 0 : index
    %c0_0 = arith.constant 0 : index
    %c0_1 = arith.constant 0 : index
    %0 = vector.load %arg1[%c0, %c0_0, %c0_1] : memref<1x48x2xi32, #tpu.memory_space<vmem>>, vector<1x48x2xi32>
    %1 = vector.shape_cast %0 : vector<1x48x2xi32> to vector<48x2xi32>
    %2 = vector.extract_strided_slice %1 {offsets = [0, 0], sizes = [48, 1], strides = [1, 1]} : vector<48x2xi32> to vector<48x1xi32>
    %3 = vector.extract_strided_slice %1 {offsets = [0, 1], sizes = [48, 1], strides = [1, 1]} : vector<48x2xi32> to vector<48x1xi32>
    %4 = tpu.iota {dimensions = array<i32: 1>} : vector<48x128xi32>
    %5 = vector.broadcast %2 : vector<48x1xi32> to vector<48x128xi32>
    %6 = arith.cmpi eq, %5, %4 : vector<48x128xi32>
    %7 = arith.extui %6 : vector<48x128xi1> to vector<48x128xi32>
    %8 = arith.sitofp %7 : vector<48x128xi32> to vector<48x128xf32>
    %9 = arith.truncf %8 : vector<48x128xf32> to vector<48x128xbf16>
    %c0_2 = arith.constant 0 : index
    %c0_3 = arith.constant 0 : index
    %10 = vector.load %arg5[%c0_2, %c0_3] : memref<128x384xbf16, #tpu.memory_space<vmem>>, vector<128x384xbf16>
    %cst = arith.constant dense<0.000000e+00> : vector<48x384xf32>
    %11 = tpu.matmul %9, %10, %cst {dimension_numbers = #tpu.dot_dimension_numbers<[1], [0], [0], [1], [0, 0, 1, 1], [], []>} : vector<48x128xbf16>, vector<128x384xbf16>, vector<48x384xf32> -> vector<48x384xf32>
    %12 = vector.extract_strided_slice %11 {offsets = [0, 0], sizes = [48, 128], strides = [1, 1]} : vector<48x384xf32> to vector<48x128xf32>
    %13 = arith.sitofp %3 : vector<48x1xi32> to vector<48x1xf32>
    %cst_4 = arith.constant 0.00787401571 : f32
    %14 = vector.broadcast %cst_4 : f32 to vector<48x1xf32>
    %15 = arith.mulf %13, %14 : vector<48x1xf32>
    %16 = arith.mulf %15, %15 : vector<48x1xf32>
    %17 = vector.extract_strided_slice %11 {offsets = [0, 128], sizes = [48, 128], strides = [1, 1]} : vector<48x384xf32> to vector<48x128xf32>
    %18 = vector.broadcast %16 : vector<48x1xf32> to vector<48x128xf32>
    %19 = arith.mulf %17, %18 : vector<48x128xf32>
    %20 = vector.extract_strided_slice %11 {offsets = [0, 256], sizes = [48, 128], strides = [1, 1]} : vector<48x384xf32> to vector<48x128xf32>
    %21 = tpu.iota {dimensions = array<i32: 0>} : vector<48x8xi32>
    %22 = tpu.iota {dimensions = array<i32: 1>} : vector<48x8xi32>
    %c16_i32 = arith.constant 16 : i32
    %23 = vector.broadcast %c16_i32 : i32 to vector<48x8xi32>
    %24 = arith.muli %22, %23 : vector<48x8xi32>
    %25 = arith.cmpi sge, %21, %24 : vector<48x8xi32>
    %c16_i32_5 = arith.constant 16 : i32
    %26 = vector.broadcast %c16_i32_5 : i32 to vector<48x8xi32>
    %27 = arith.addi %24, %26 : vector<48x8xi32>
    %28 = arith.cmpi slt, %21, %27 : vector<48x8xi32>
    %29 = arith.andi %25, %28 : vector<48x8xi1>
    %30 = arith.extui %29 : vector<48x8xi1> to vector<48x8xi32>
    %31 = arith.sitofp %30 : vector<48x8xi32> to vector<48x8xf32>
    %32 = arith.truncf %31 : vector<48x8xf32> to vector<48x8xbf16>
    %c0_6 = arith.constant 0 : index
    %c0_7 = arith.constant 0 : index
    %c0_8 = arith.constant 0 : index
    %33 = vector.load %arg2[%c0_6, %c0_7, %c0_8] : memref<1x8x256xf32, #tpu.memory_space<vmem>>, vector<1x8x256xf32>
    %34 = vector.shape_cast %33 : vector<1x8x256xf32> to vector<8x256xf32>
    %35 = arith.truncf %34 : vector<8x256xf32> to vector<8x256xbf16>
    %cst_9 = arith.constant dense<0.000000e+00> : vector<48x256xf32>
    %36 = tpu.matmul %32, %35, %cst_9 {dimension_numbers = #tpu.dot_dimension_numbers<[1], [0], [0], [1], [0, 0, 1, 1], [], []>} : vector<48x8xbf16>, vector<8x256xbf16>, vector<48x256xf32> -> vector<48x256xf32>
    %37 = vector.extract_strided_slice %36 {offsets = [0, 0], sizes = [48, 128], strides = [1, 1]} : vector<48x256xf32> to vector<48x128xf32>
    %38 = vector.extract_strided_slice %36 {offsets = [0, 128], sizes = [48, 128], strides = [1, 1]} : vector<48x256xf32> to vector<48x128xf32>
    %39 = tpu.concatenate %12, %19 in 1 : vector<48x128xf32>, vector<48x128xf32> -> vector<48x256xf32>
    %40 = arith.truncf %39 : vector<48x256xf32> to vector<48x256xbf16>
    %41 = tpu.concatenate %40, %9 in 1 : vector<48x256xbf16>, vector<48x128xbf16> -> vector<48x384xbf16>
    %c0_10 = arith.constant 0 : index
    %c0_11 = arith.constant 0 : index
    %42 = vector.load %arg4[%c0_10, %c0_11] : memref<48x48xbf16, #tpu.memory_space<vmem>>, vector<48x48xbf16>
    %cst_12 = arith.constant dense<0.000000e+00> : vector<48x384xf32>
    %43 = tpu.matmul %42, %41, %cst_12 {dimension_numbers = #tpu.dot_dimension_numbers<[1], [0], [0], [1], [0, 0, 1, 1], [], []>} : vector<48x48xbf16>, vector<48x384xbf16>, vector<48x384xf32> -> vector<48x384xf32>
    %44 = vector.extract_strided_slice %43 {offsets = [0, 0], sizes = [48, 128], strides = [1, 1]} : vector<48x384xf32> to vector<48x128xf32>
    %45 = vector.extract_strided_slice %43 {offsets = [0, 128], sizes = [48, 128], strides = [1, 1]} : vector<48x384xf32> to vector<48x128xf32>
    %46 = arith.subf %45, %19 : vector<48x128xf32>
    %47 = vector.extract_strided_slice %43 {offsets = [0, 256], sizes = [48, 128], strides = [1, 1]} : vector<48x384xf32> to vector<48x128xf32>
    %48 = arith.extui %6 : vector<48x128xi1> to vector<48x128xi32>
    %49 = arith.sitofp %48 : vector<48x128xi32> to vector<48x128xf32>
    %50 = arith.subf %47, %49 : vector<48x128xf32>
    %cst_13 = arith.constant 5.000000e-01 : f32
    %51 = vector.broadcast %cst_13 : f32 to vector<48x128xf32>
    %52 = arith.cmpf ogt, %50, %51 : vector<48x128xf32>
    %53 = arith.addf %46, %44 : vector<48x128xf32>
    %c0_14 = arith.constant 0 : index
    %c0_15 = arith.constant 0 : index
    %54 = vector.load %arg3[%c0_14, %c0_15] : memref<48x128xf32, #tpu.memory_space<vmem>>, vector<48x128xf32>
    %55 = arith.addf %53, %54 : vector<48x128xf32>
    %56 = arith.subf %55, %12 : vector<48x128xf32>
    %cst_16 = arith.constant 11.3137083 : f32
    %57 = vector.broadcast %cst_16 : f32 to vector<48x128xf32>
    %58 = arith.mulf %57, %56 : vector<48x128xf32>
    %59 = arith.addf %37, %58 : vector<48x128xf32>
    %60 = arith.truncf %59 : vector<48x128xf32> to vector<48x128xbf16>
    %61 = arith.addf %55, %20 : vector<48x128xf32>
    %cst_17 = arith.constant 11.3137083 : f32
    %62 = vector.broadcast %cst_17 : f32 to vector<48x128xf32>
    %63 = arith.mulf %62, %61 : vector<48x128xf32>
    %64 = arith.addf %37, %63 : vector<48x128xf32>
    %65 = arith.truncf %64 : vector<48x128xf32> to vector<48x128xbf16>
    %c0_18 = arith.constant 0 : index
    %c0_19 = arith.constant 0 : index
    %66 = vector.load %arg6[%c0_18, %c0_19] : memref<128x128xbf16, #tpu.memory_space<vmem>>, vector<128x128xbf16>
    %cst_20 = arith.constant dense<0.000000e+00> : vector<48x128xf32>
    %67 = tpu.matmul %60, %66, %cst_20 {dimension_numbers = #tpu.dot_dimension_numbers<[1], [0], [0], [1], [0, 0, 1, 1], [], []>} : vector<48x128xbf16>, vector<128x128xbf16>, vector<48x128xf32> -> vector<48x128xf32>
    %c0_21 = arith.constant 0 : index
    %c0_22 = arith.constant 0 : index
    %68 = vector.load %arg7[%c0_21, %c0_22] : memref<1x128xf32, #tpu.memory_space<vmem>>, vector<1x128xf32>
    %69 = vector.broadcast %68 : vector<1x128xf32> to vector<48x128xf32>
    %70 = arith.addf %67, %69 : vector<48x128xf32>
    %cst_23 = arith.constant 0.000000e+00 : f32
    %71 = vector.broadcast %cst_23 : f32 to vector<48x128xf32>
    %72 = arith.maximumf %70, %71 : vector<48x128xf32>
    %73 = arith.truncf %72 : vector<48x128xf32> to vector<48x128xbf16>
    %c0_24 = arith.constant 0 : index
    %c0_25 = arith.constant 0 : index
    %74 = vector.load %arg8[%c0_24, %c0_25] : memref<128x128xbf16, #tpu.memory_space<vmem>>, vector<128x128xbf16>
    %cst_26 = arith.constant dense<0.000000e+00> : vector<48x128xf32>
    %75 = tpu.matmul %73, %74, %cst_26 {dimension_numbers = #tpu.dot_dimension_numbers<[1], [0], [0], [1], [0, 0, 1, 1], [], []>} : vector<48x128xbf16>, vector<128x128xbf16>, vector<48x128xf32> -> vector<48x128xf32>
    %c0_27 = arith.constant 0 : index
    %c0_28 = arith.constant 0 : index
    %76 = vector.load %arg9[%c0_27, %c0_28] : memref<1x128xf32, #tpu.memory_space<vmem>>, vector<1x128xf32>
    %77 = vector.broadcast %76 : vector<1x128xf32> to vector<48x128xf32>
    %78 = arith.addf %75, %77 : vector<48x128xf32>
    %c0_29 = arith.constant 0 : index
    %c0_30 = arith.constant 0 : index
    %79 = vector.load %arg10[%c0_29, %c0_30] : memref<128x128xbf16, #tpu.memory_space<vmem>>, vector<128x128xbf16>
    %cst_31 = arith.constant dense<0.000000e+00> : vector<48x128xf32>
    %80 = tpu.matmul %65, %79, %cst_31 {dimension_numbers = #tpu.dot_dimension_numbers<[1], [0], [0], [1], [0, 0, 1, 1], [], []>} : vector<48x128xbf16>, vector<128x128xbf16>, vector<48x128xf32> -> vector<48x128xf32>
    %c0_32 = arith.constant 0 : index
    %c0_33 = arith.constant 0 : index
    %81 = vector.load %arg11[%c0_32, %c0_33] : memref<1x128xf32, #tpu.memory_space<vmem>>, vector<1x128xf32>
    %82 = vector.broadcast %81 : vector<1x128xf32> to vector<48x128xf32>
    %83 = arith.addf %80, %82 : vector<48x128xf32>
    %cst_34 = arith.constant 0.000000e+00 : f32
    %84 = vector.broadcast %cst_34 : f32 to vector<48x128xf32>
    %85 = arith.maximumf %83, %84 : vector<48x128xf32>
    %86 = arith.truncf %85 : vector<48x128xf32> to vector<48x128xbf16>
    %c0_35 = arith.constant 0 : index
    %c0_36 = arith.constant 0 : index
    %87 = vector.load %arg12[%c0_35, %c0_36] : memref<128x128xbf16, #tpu.memory_space<vmem>>, vector<128x128xbf16>
    %cst_37 = arith.constant dense<0.000000e+00> : vector<48x128xf32>
    %88 = tpu.matmul %86, %87, %cst_37 {dimension_numbers = #tpu.dot_dimension_numbers<[1], [0], [0], [1], [0, 0, 1, 1], [], []>} : vector<48x128xbf16>, vector<128x128xbf16>, vector<48x128xf32> -> vector<48x128xf32>
    %c0_38 = arith.constant 0 : index
    %c0_39 = arith.constant 0 : index
    %89 = vector.load %arg13[%c0_38, %c0_39] : memref<1x128xf32, #tpu.memory_space<vmem>>, vector<1x128xf32>
    %90 = vector.broadcast %89 : vector<1x128xf32> to vector<48x128xf32>
    %91 = arith.addf %88, %90 : vector<48x128xf32>
    %cst_40 = arith.constant -1.000000e+20 : f32
    %92 = vector.broadcast %cst_40 : f32 to vector<48x128xf32>
    %93 = arith.select %52, %92, %78 : vector<48x128xi1>, vector<48x128xf32>
    %cst_41 = arith.constant dense<0xFF800000> : vector<48xf32>
    %94 = vector.multi_reduction <maximumf>, %93, %cst_41 [1] : vector<48x128xf32> to vector<48xf32>
    %95 = vector.shape_cast %94 : vector<48xf32> to vector<48x1xf32>
    %96 = vector.broadcast %95 : vector<48x1xf32> to vector<48x128xf32>
    %97 = arith.subf %93, %96 : vector<48x128xf32>
    %98 = math.exp %97 : vector<48x128xf32>
    %cst_42 = arith.constant dense<0.000000e+00> : vector<48xf32>
    %99 = vector.multi_reduction <add>, %98, %cst_42 [1] : vector<48x128xf32> to vector<48xf32>
    %100 = vector.shape_cast %99 : vector<48xf32> to vector<48x1xf32>
    %101 = math.log %100 : vector<48x1xf32>
    %cst_43 = arith.constant 0.000000e+00 : f32
    %102 = vector.broadcast %cst_43 : f32 to vector<48x128xf32>
    %103 = arith.select %52, %102, %38 : vector<48x128xi1>, vector<48x128xf32>
    %cst_44 = arith.constant dense<0.000000e+00> : vector<48xf32>
    %104 = vector.multi_reduction <add>, %103, %cst_44 [1] : vector<48x128xf32> to vector<48xf32>
    %105 = vector.shape_cast %104 : vector<48xf32> to vector<48x1xf32>
    %106 = tpu.reciprocal %105 {approx = true} : vector<48x1xf32> -> vector<48x1xf32>
    %107 = arith.mulf %103, %97 : vector<48x128xf32>
    %cst_45 = arith.constant dense<0.000000e+00> : vector<48xf32>
    %108 = vector.multi_reduction <add>, %107, %cst_45 [1] : vector<48x128xf32> to vector<48xf32>
    %109 = vector.shape_cast %108 : vector<48xf32> to vector<48x1xf32>
    %110 = arith.mulf %106, %109 : vector<48x1xf32>
    %111 = arith.subf %110, %101 : vector<48x1xf32>
    %cst_46 = arith.constant dense<0xFF800000> : vector<48xf32>
    %112 = vector.multi_reduction <maximumf>, %91, %cst_46 [1] : vector<48x128xf32> to vector<48xf32>
    %113 = vector.shape_cast %112 : vector<48xf32> to vector<48x1xf32>
    %114 = vector.broadcast %113 : vector<48x1xf32> to vector<48x128xf32>
    %115 = arith.subf %91, %114 : vector<48x128xf32>
    %116 = math.exp %115 : vector<48x128xf32>
    %cst_47 = arith.constant dense<0.000000e+00> : vector<48xf32>
    %117 = vector.multi_reduction <add>, %116, %cst_47 [1] : vector<48x128xf32> to vector<48xf32>
    %118 = vector.shape_cast %117 : vector<48xf32> to vector<48x1xf32>
    %119 = math.log %118 : vector<48x1xf32>
    %120 = tpu.iota {dimensions = array<i32: 1>} : vector<48x128xi32>
    %121 = vector.broadcast %3 : vector<48x1xi32> to vector<48x128xi32>
    %122 = arith.cmpi eq, %121, %120 : vector<48x128xi32>
    %cst_48 = arith.constant 0.000000e+00 : f32
    %123 = vector.broadcast %cst_48 : f32 to vector<48x128xf32>
    %124 = arith.select %122, %115, %123 : vector<48x128xi1>, vector<48x128xf32>
    %cst_49 = arith.constant dense<0.000000e+00> : vector<48xf32>
    %125 = vector.multi_reduction <add>, %124, %cst_49 [1] : vector<48x128xf32> to vector<48xf32>
    %126 = vector.shape_cast %125 : vector<48xf32> to vector<48x1xf32>
    %127 = arith.subf %126, %119 : vector<48x1xf32>
    %128 = tpu.iota {dimensions = array<i32: 1>} : vector<48x128xi32>
    %c0_i32 = arith.constant 0 : i32
    %129 = vector.broadcast %c0_i32 : i32 to vector<48x128xi32>
    %130 = arith.cmpi eq, %128, %129 : vector<48x128xi32>
    %c1_i32 = arith.constant 1 : i32
    %131 = vector.broadcast %c1_i32 : i32 to vector<48x128xi32>
    %132 = arith.cmpi eq, %128, %131 : vector<48x128xi32>
    %cst_50 = arith.constant 0.000000e+00 : f32
    %133 = vector.shape_cast %127 : vector<48x1xf32> to vector<48x1xf32>
    %134 = vector.broadcast %133 : vector<48x1xf32> to vector<48x128xf32>
    %135 = vector.broadcast %cst_50 : f32 to vector<48x128xf32>
    %136 = arith.select %132, %134, %135 : vector<48x128xi1>, vector<48x128xf32>
    %137 = vector.shape_cast %111 : vector<48x1xf32> to vector<48x1xf32>
    %138 = vector.broadcast %137 : vector<48x1xf32> to vector<48x128xf32>
    %139 = arith.select %130, %138, %136 : vector<48x128xi1>, vector<48x128xf32>
    %140 = tpu.iota {dimensions = array<i32: 0>} : vector<3x48xi32>
    %c16_i32_51 = arith.constant 16 : i32
    %141 = vector.broadcast %c16_i32_51 : i32 to vector<3x48xi32>
    %142 = arith.muli %140, %141 : vector<3x48xi32>
    %143 = tpu.iota {dimensions = array<i32: 1>} : vector<3x48xi32>
    %144 = arith.cmpi sge, %143, %142 : vector<3x48xi32>
    %c16_i32_52 = arith.constant 16 : i32
    %145 = vector.broadcast %c16_i32_52 : i32 to vector<3x48xi32>
    %146 = arith.addi %142, %145 : vector<3x48xi32>
    %147 = arith.cmpi slt, %143, %146 : vector<3x48xi32>
    %148 = arith.andi %144, %147 : vector<3x48xi1>
    %149 = arith.extui %148 : vector<3x48xi1> to vector<3x48xi32>
    %150 = arith.sitofp %149 : vector<3x48xi32> to vector<3x48xf32>
    %cst_53 = arith.constant dense<0.000000e+00> : vector<3x128xf32>
    %151 = tpu.matmul %150, %139, %cst_53 {dimension_numbers = #tpu.dot_dimension_numbers<[1], [0], [0], [1], [0, 0, 1, 1], [], []>} : vector<3x48xf32>, vector<48x128xf32>, vector<3x128xf32> -> vector<3x128xf32>
    %cst_54 = arith.constant 5.000000e-01 : f32
    %152 = vector.broadcast %cst_54 : f32 to vector<3x128xf32>
    %153 = arith.mulf %151, %152 : vector<3x128xf32>
    %c0_55 = arith.constant 0 : index
    %c0_56 = arith.constant 0 : index
    %c0_57 = arith.constant 0 : index
    %154 = vector.load %arg14[%c0_55, %c0_56, %c0_57] : memref<1x3x128xf32, #tpu.memory_space<vmem>>, vector<1x3x128xf32>
    %155 = vector.shape_cast %154 : vector<1x3x128xf32> to vector<3x128xf32>
    %156 = vector.shape_cast %153 : vector<3x128xf32> to vector<1x3x128xf32>
    tpu.vector_store %arg14[%c0_55, %c0_56, %c0_57], %156 {strides = array<i32>} : memref<1x3x128xf32, #tpu.memory_space<vmem>>, vector<1x3x128xf32>,
    return
  }
  func.func @transform_0(%arg0: i32) -> (i32, i32, i32) {
    %c0_i32 = arith.constant 0 : i32
    %c0_i32_0 = arith.constant 0 : i32
    %c0_i32_1 = arith.constant 0 : i32
    return %arg0, %c0_i32, %c0_i32_0 : i32, i32, i32
  }
  func.func @transform_1(%arg0: i32) -> (i32, i32, i32) {
    %c0_i32 = arith.constant 0 : i32
    %c0_i32_0 = arith.constant 0 : i32
    %c0_i32_1 = arith.constant 0 : i32
    return %arg0, %c0_i32, %c0_i32_0 : i32, i32, i32
  }
  func.func @transform_2(%arg0: i32) -> (i32, i32) {
    %c0_i32 = arith.constant 0 : i32
    %c0_i32_0 = arith.constant 0 : i32
    %c0_i32_1 = arith.constant 0 : i32
    return %c0_i32, %c0_i32_0 : i32, i32
  }
  func.func @transform_3(%arg0: i32) -> (i32, i32) {
    %c0_i32 = arith.constant 0 : i32
    %c0_i32_0 = arith.constant 0 : i32
    %c0_i32_1 = arith.constant 0 : i32
    return %c0_i32, %c0_i32_0 : i32, i32
  }
  func.func @transform_4(%arg0: i32) -> (i32, i32) {
    %c0_i32 = arith.constant 0 : i32
    %c0_i32_0 = arith.constant 0 : i32
    %c0_i32_1 = arith.constant 0 : i32
    return %c0_i32, %c0_i32_0 : i32, i32
  }
  func.func @transform_5(%arg0: i32) -> (i32, i32) {
    %c0_i32 = arith.constant 0 : i32
    %c0_i32_0 = arith.constant 0 : i32
    %c0_i32_1 = arith.constant 0 : i32
    return %c0_i32, %c0_i32_0 : i32, i32
  }
  func.func @transform_6(%arg0: i32) -> (i32, i32) {
    %c0_i32 = arith.constant 0 : i32
    %c0_i32_0 = arith.constant 0 : i32
    %c0_i32_1 = arith.constant 0 : i32
    return %c0_i32, %c0_i32_0 : i32, i32
  }
  func.func @transform_7(%arg0: i32) -> (i32, i32) {
    %c0_i32 = arith.constant 0 : i32
    %c0_i32_0 = arith.constant 0 : i32
    %c0_i32_1 = arith.constant 0 : i32
    return %c0_i32, %c0_i32_0 : i32, i32
  }
  func.func @transform_8(%arg0: i32) -> (i32, i32) {
    %c0_i32 = arith.constant 0 : i32
    %c0_i32_0 = arith.constant 0 : i32
    %c0_i32_1 = arith.constant 0 : i32
    return %c0_i32, %c0_i32_0 : i32, i32
  }
  func.func @transform_9(%arg0: i32) -> (i32, i32) {
    %c0_i32 = arith.constant 0 : i32
    %c0_i32_0 = arith.constant 0 : i32
    %c0_i32_1 = arith.constant 0 : i32
    return %c0_i32, %c0_i32_0 : i32, i32
  }
  func.func @transform_10(%arg0: i32) -> (i32, i32) {
    %c0_i32 = arith.constant 0 : i32
    %c0_i32_0 = arith.constant 0 : i32
    %c0_i32_1 = arith.constant 0 : i32
    return %c0_i32, %c0_i32_0 : i32, i32
  }
  func.func @transform_11(%arg0: i32) -> (i32, i32) {
    %c0_i32 = arith.constant 0 : i32
    %c0_i32_0 = arith.constant 0 : i32
    %c0_i32_1 = arith.constant 0 : i32
    return %c0_i32, %c0_i32_0 : i32, i32
  }
  func.func @transform_12(%arg0: i32) -> (i32, i32) {
    %c0_i32 = arith.constant 0 : i32
    %c0_i32_0 = arith.constant 0 : i32
    %c0_i32_1 = arith.constant 0 : i32
    return %c0_i32, %c0_i32_0 : i32, i32
  }
  func.func @transform_13(%arg0: i32) -> (i32, i32, i32) {
    %c0_i32 = arith.constant 0 : i32
    %c0_i32_0 = arith.constant 0 : i32
    %c0_i32_1 = arith.constant 0 : i32
    return %arg0, %c0_i32, %c0_i32_0 : i32, i32, i32
  }
}

</mosaic_0001>

<llo_original>
// kernel: tpu_custom_call.1
$region0: #{tpu_custom_call.1}
  #allocation0 [shape = 'u32[]', space=smem, size = 0x4, offset = 0x4, fixed_abs, tag = 'smem constant byte address 0x4 - core index']
  #allocation1 [shape = 'u32[144,128]{1,0:T(1,128)}', space=vmem, size = 0x12000, scoped, tag = 'internal scratch']
  %s0 = inlined_call_operand.vmem [shape: s32[2,48,2], index: 0, kind: input, shape index: {}]
  %s1 = inlined_call_operand.hbm [shape: f32[2,8,256], index: 1, kind: input, shape index: {}]
  %s2 = inlined_call_operand.hbm [shape: f32[48,128], index: 2, kind: input, shape index: {}]
  %s3 = inlined_call_operand.hbm [shape: bf16[48,48], index: 3, kind: input, shape index: {}]
  %s4 = inlined_call_operand.hbm [shape: bf16[128,384], index: 4, kind: input, shape index: {}]
  %s5 = inlined_call_operand.vmem [shape: bf16[128,128], index: 5, kind: input, shape index: {}]
  %s6 = inlined_call_operand.vmem [shape: f32[1,128], index: 6, kind: input, shape index: {}]
  %s7 = inlined_call_operand.hbm [shape: bf16[128,128], index: 7, kind: input, shape index: {}]
  %s8 = inlined_call_operand.vmem [shape: f32[1,128], index: 8, kind: input, shape index: {}]
  %s9 = inlined_call_operand.vmem [shape: bf16[128,128], index: 9, kind: input, shape index: {}]
  %s10 = inlined_call_operand.vmem [shape: f32[1,128], index: 10, kind: input, shape index: {}]
  %s11 = inlined_call_operand.hbm [shape: bf16[128,128], index: 11, kind: input, shape index: {}]
  %s12 = inlined_call_operand.vmem [shape: f32[1,128], index: 12, kind: input, shape index: {}]
  %s13 = inlined_call_operand.vmem [shape: f32[2,3,128], index: 13, kind: output, shape index: {}]
  %s14 = sld [smem:[#allocation0]]
  $region109: #{tpu_custom_call.1} parent=0
    _
  %s16 = ssub.s32 1, %s14
  %s17 = scalar_select 0, %s16, %s14
  $region1: #{tpu_custom_call.1} parent=0
    #allocation2 [shape = 'u8[16384]{0}', space=vmem, size = 0x4000, scoped, tag = 'input window, operand 1']
    #allocation3 [shape = 's32[2]{0}', space=sflag, size = 0x8, scoped, tag = 'scoped memory for tpu_custom_call.1']
    #allocation4 [shape = 'u8[24576]{0}', space=vmem, size = 0x6000, scoped, tag = 'input window, operand 2, single buffered']
    #allocation5 [shape = 's32[1]{0}', space=sflag, size = 0x4, scoped, tag = 'scoped memory for tpu_custom_call.1']
    #allocation6 [shape = 'u8[12288]{0}', space=vmem, size = 0x3000, scoped, tag = 'input window, operand 3, single buffered']
    #allocation7 [shape = 'u8[98304]{0}', space=vmem, size = 0x18000, scoped, tag = 'input window, operand 4, single buffered']
    #allocation8 [shape = 's32[1]{0}', space=sflag, size = 0x4, scoped, tag = 'scoped memory for tpu_custom_call.1']
    #allocation9 [shape = 'u8[32768]{0}', space=vmem, size = 0x8000, scoped, tag = 'input window, operand 7, single buffered']
    #allocation10 [shape = 'u8[32768]{0}', space=vmem, size = 0x8000, scoped, tag = 'input window, operand 11, single buffered']
    #allocation11 [shape = 's32[1]{0}', space=sflag, size = 0x4, scoped, tag = 'scoped memory for tpu_custom_call.1']
    %18 = vsyncpa [#allocation3], 0
    %s19 = scalar_lea.sflag [#allocation3], 1
    %20 = vsyncpa %s19, 0
    %21 = vsyncpa [#allocation5], 0
    %22 = vsyncpa [#allocation8], 0
    %23 = vsyncpa [#allocation11], 0
    loop: start=0, step=1, limit=4
    $region2: #{tpu_custom_call.1} parent=1 // loop_pre_header
      _
    $region3: #{tpu_custom_call.1} parent=1 // loop_header
      %s25 = sphi 0, %s29
      %p26 = scmp.ge.s32.totalorder %s25, 4
      %s35 = sphi 0, %s37
      %s38 = sphi 0, %s35
      %s39 = sphi 0, %s38
      %s55 = sphi 0, %s39
      %s61 = sphi 0, %s63
      %s64 = sphi 0, %s61
      %s65 = sphi 0, %s64
      %s81 = sphi 0, %s65
      %s85 = sphi 0, %s85
      %s87 = sphi 0, %s85
      %s88 = sphi 0, %s87
      %s102 = sphi 0, %s88
      %s106 = sphi 0, %s106
      %s108 = sphi 0, %s106
      %s109 = sphi 0, %s108
      %s123 = sphi 0, %s109
      %s127 = sphi 0, %s127
      %s129 = sphi 0, %s127
      %s130 = sphi 0, %s129
      %s144 = sphi 0, %s130
      %s148 = sphi 0, %s148
      %s150 = sphi 0, %s148
      %s151 = sphi 0, %s150
      %s165 = sphi 0, %s151
      %s169 = sphi 0, %s169
      %s171 = sphi 0, %s169
      %s172 = sphi 0, %s171
      %s186 = sphi 0, %s172
      %s190 = sphi 0, %s190
      %s192 = sphi 0, %s190
      %s193 = sphi 0, %s192
      %s207 = sphi 0, %s193
      %s211 = sphi 0, %s211
      %s213 = sphi 0, %s211
      %s214 = sphi 0, %s213
      %s228 = sphi 0, %s214
      %s232 = sphi 0, %s232
      %s234 = sphi 0, %s232
      %s235 = sphi 0, %s234
      %s249 = sphi 0, %s235
      %s253 = sphi 0, %s253
      %s255 = sphi 0, %s253
      %s256 = sphi 0, %s255
      %s270 = sphi 0, %s256
      %s274 = sphi 0, %s274
      %s276 = sphi 0, %s274
      %s277 = sphi 0, %s276
      %s291 = sphi 0, %s277
      %s295 = sphi 0, %s295
      %s297 = sphi 0, %s295
      %s298 = sphi 0, %s297
      %s312 = sphi 0, %s298
      %s318 = sphi 0, %s320
      %s321 = sphi 0, %s318
      %s322 = sphi 0, %s321
      %s338 = sphi 0, %s322
    $region4: #{tpu_custom_call.1} parent=1 // loop_header_branch
      %28 = sbr.rel (%p26) target = $region8
    $region5: #{tpu_custom_call.1} parent=1 // loop_body
      %s30 = ssub.s32 %s25, 1
      %s31 = ssub.s32 %s25, 2
      %s32 = sadd.s32 %s25, 1
      %s33 = ssub.s32 %s25, %s32
      %p34 = scmp.eq.s32.totalorder %s33, 0
      %s36 = sadd.s32 %s35, 1
      %s37 = scalar_select %p34, %s35, %s36
      %p40 = pneg %p34
      %p41 = scmp.eq.s32.totalorder %s25, 1
      %p42 = por %p40, %p41
      %p43 = scmp.ne.s32.totalorder %s35, %s38
      %p44 = scmp.eq.s32.totalorder %s25, 0
      %p45 = por %p43, %p44
      %p46 = scmp.ne.s32.totalorder %s35, %s38
      %p47 = scmp.eq.s32.totalorder %s30, 1
      %p48 = por %p46, %p47
      %p49 = scmp.ne.s32.totalorder %s38, %s39
      %p50 = scmp.eq.s32.totalorder %s30, 0
      %p51 = por %p49, %p50
      %p52 = scmp.ne.s32.totalorder %s38, %s39
      %p53 = scmp.eq.s32.totalorder %s31, 1
      %p54 = por %p52, %p53
      %p56 = scmp.ne.s32.totalorder %s39, %s55
      %p57 = scmp.eq.s32.totalorder %s31, 0
      %p58 = por %p56, %p57
      %s59 = ssub.s32 %s25, %s32
      %p60 = scmp.eq.s32.totalorder %s59, 0
      %s62 = sadd.s32 %s61, 1
      %s63 = scalar_select %p60, %s61, %s62
      %p66 = pneg %p60
      %p67 = scmp.eq.s32.totalorder %s25, 1
      %p68 = por %p66, %p67
      %p69 = scmp.ne.s32.totalorder %s61, %s64
      %p70 = scmp.eq.s32.totalorder %s25, 0
      %p71 = por %p69, %p70
      %p72 = scmp.ne.s32.totalorder %s61, %s64
      %p73 = scmp.eq.s32.totalorder %s30, 1
      %p74 = por %p72, %p73
      %p75 = scmp.ne.s32.totalorder %s64, %s65
      %p76 = scmp.eq.s32.totalorder %s30, 0
      %p77 = por %p75, %p76
      %p78 = scmp.ne.s32.totalorder %s64, %s65
      %p79 = scmp.eq.s32.totalorder %s31, 1
      %p80 = por %p78, %p79
      %p82 = scmp.ne.s32.totalorder %s65, %s81
      %p83 = scmp.eq.s32.totalorder %s31, 0
      %p84 = por %p82, %p83
      %s86 = sadd.s32 %s85, 1
      %p89 = scmp.eq.s32.totalorder %s25, 1
      %p90 = scmp.ne.s32.totalorder %s85, %s87
      %p91 = scmp.eq.s32.totalorder %s25, 0
      %p92 = por %p90, %p91
      %p93 = scmp.ne.s32.totalorder %s85, %s87
      %p94 = scmp.eq.s32.totalorder %s30, 1
      %p95 = por %p93, %p94
      %p96 = scmp.ne.s32.totalorder %s87, %s88
      %p97 = scmp.eq.s32.totalorder %s30, 0
      %p98 = por %p96, %p97
      %p99 = scmp.ne.s32.totalorder %s87, %s88
      %p100 = scmp.eq.s32.totalorder %s31, 1
      %p101 = por %p99, %p100
      %p103 = scmp.ne.s32.totalorder %s88, %s102
      %p104 = scmp.eq.s32.totalorder %s31, 0
      %p105 = por %p103, %p104
      %s107 = sadd.s32 %s106, 1
      %p110 = scmp.eq.s32.totalorder %s25, 1
      %p111 = scmp.ne.s32.totalorder %s106, %s108
      %p112 = scmp.eq.s32.totalorder %s25, 0
      %p113 = por %p111, %p112
      %p114 = scmp.ne.s32.totalorder %s106, %s108
      %p115 = scmp.eq.s32.totalorder %s30, 1
      %p116 = por %p114, %p115
      %p117 = scmp.ne.s32.totalorder %s108, %s109
      %p118 = scmp.eq.s32.totalorder %s30, 0
      %p119 = por %p117, %p118
      %p120 = scmp.ne.s32.totalorder %s108, %s109
      %p121 = scmp.eq.s32.totalorder %s31, 1
      %p122 = por %p120, %p121
      %p124 = scmp.ne.s32.totalorder %s109, %s123
      %p125 = scmp.eq.s32.totalorder %s31, 0
      %p126 = por %p124, %p125
      %s128 = sadd.s32 %s127, 1
      %p131 = scmp.eq.s32.totalorder %s25, 1
      %p132 = scmp.ne.s32.totalorder %s127, %s129
      %p133 = scmp.eq.s32.totalorder %s25, 0
      %p134 = por %p132, %p133
      %p135 = scmp.ne.s32.totalorder %s127, %s129
      %p136 = scmp.eq.s32.totalorder %s30, 1
      %p137 = por %p135, %p136
      %p138 = scmp.ne.s32.totalorder %s129, %s130
      %p139 = scmp.eq.s32.totalorder %s30, 0
      %p140 = por %p138, %p139
      %p141 = scmp.ne.s32.totalorder %s129, %s130
      %p142 = scmp.eq.s32.totalorder %s31, 1
      %p143 = por %p141, %p142
      %p145 = scmp.ne.s32.totalorder %s130, %s144
      %p146 = scmp.eq.s32.totalorder %s31, 0
      %p147 = por %p145, %p146
      %s149 = sadd.s32 %s148, 1
      %p152 = scmp.eq.s32.totalorder %s25, 1
      %p153 = scmp.ne.s32.totalorder %s148, %s150
      %p154 = scmp.eq.s32.totalorder %s25, 0
      %p155 = por %p153, %p154
      %p156 = scmp.ne.s32.totalorder %s148, %s150
      %p157 = scmp.eq.s32.totalorder %s30, 1
      %p158 = por %p156, %p157
      %p159 = scmp.ne.s32.totalorder %s150, %s151
      %p160 = scmp.eq.s32.totalorder %s30, 0
      %p161 = por %p159, %p160
      %p162 = scmp.ne.s32.totalorder %s150, %s151
      %p163 = scmp.eq.s32.totalorder %s31, 1
      %p164 = por %p162, %p163
      %p166 = scmp.ne.s32.totalorder %s151, %s165
      %p167 = scmp.eq.s32.totalorder %s31, 0
      %p168 = por %p166, %p167
      %s170 = sadd.s32 %s169, 1
      %p173 = scmp.eq.s32.totalorder %s25, 1
      %p174 = scmp.ne.s32.totalorder %s169, %s171
      %p175 = scmp.eq.s32.totalorder %s25, 0
      %p176 = por %p174, %p175
      %p177 = scmp.ne.s32.totalorder %s169, %s171
      %p178 = scmp.eq.s32.totalorder %s30, 1
      %p179 = por %p177, %p178
      %p180 = scmp.ne.s32.totalorder %s171, %s172
      %p181 = scmp.eq.s32.totalorder %s30, 0
      %p182 = por %p180, %p181
      %p183 = scmp.ne.s32.totalorder %s171, %s172
      %p184 = scmp.eq.s32.totalorder %s31, 1
      %p185 = por %p183, %p184
      %p187 = scmp.ne.s32.totalorder %s172, %s186
      %p188 = scmp.eq.s32.totalorder %s31, 0
      %p189 = por %p187, %p188
      %s191 = sadd.s32 %s190, 1
      %p194 = scmp.eq.s32.totalorder %s25, 1
      %p195 = scmp.ne.s32.totalorder %s190, %s192
      %p196 = scmp.eq.s32.totalorder %s25, 0
      %p197 = por %p195, %p196
      %p198 = scmp.ne.s32.totalorder %s190, %s192
      %p199 = scmp.eq.s32.totalorder %s30, 1
      %p200 = por %p198, %p199
      %p201 = scmp.ne.s32.totalorder %s192, %s193
      %p202 = scmp.eq.s32.totalorder %s30, 0
      %p203 = por %p201, %p202
      %p204 = scmp.ne.s32.totalorder %s192, %s193
      %p205 = scmp.eq.s32.totalorder %s31, 1
      %p206 = por %p204, %p205
      %p208 = scmp.ne.s32.totalorder %s193, %s207
      %p209 = scmp.eq.s32.totalorder %s31, 0
      %p210 = por %p208, %p209
      %s212 = sadd.s32 %s211, 1
      %p215 = scmp.eq.s32.totalorder %s25, 1
      %p216 = scmp.ne.s32.totalorder %s211, %s213
      %p217 = scmp.eq.s32.totalorder %s25, 0
      %p218 = por %p216, %p217
      %p219 = scmp.ne.s32.totalorder %s211, %s213
      %p220 = scmp.eq.s32.totalorder %s30, 1
      %p221 = por %p219, %p220
      %p222 = scmp.ne.s32.totalorder %s213, %s214
      %p223 = scmp.eq.s32.totalorder %s30, 0
      %p224 = por %p222, %p223
      %p225 = scmp.ne.s32.totalorder %s213, %s214
      %p226 = scmp.eq.s32.totalorder %s31, 1
      %p227 = por %p225, %p226
      %p229 = scmp.ne.s32.totalorder %s214, %s228
      %p230 = scmp.eq.s32.totalorder %s31, 0
      %p231 = por %p229, %p230
      %s233 = sadd.s32 %s232, 1
      %p236 = scmp.eq.s32.totalorder %s25, 1
      %p237 = scmp.ne.s32.totalorder %s232, %s234
      %p238 = scmp.eq.s32.totalorder %s25, 0
      %p239 = por %p237, %p238
      %p240 = scmp.ne.s32.totalorder %s232, %s234
      %p241 = scmp.eq.s32.totalorder %s30, 1
      %p242 = por %p240, %p241
      %p243 = scmp.ne.s32.totalorder %s234, %s235
      %p244 = scmp.eq.s32.totalorder %s30, 0
      %p245 = por %p243, %p244
      %p246 = scmp.ne.s32.totalorder %s234, %s235
      %p247 = scmp.eq.s32.totalorder %s31, 1
      %p248 = por %p246, %p247
      %p250 = scmp.ne.s32.totalorder %s235, %s249
      %p251 = scmp.eq.s32.totalorder %s31, 0
      %p252 = por %p250, %p251
      %s254 = sadd.s32 %s253, 1
      %p257 = scmp.eq.s32.totalorder %s25, 1
      %p258 = scmp.ne.s32.totalorder %s253, %s255
      %p259 = scmp.eq.s32.totalorder %s25, 0
      %p260 = por %p258, %p259
      %p261 = scmp.ne.s32.totalorder %s253, %s255
      %p262 = scmp.eq.s32.totalorder %s30, 1
      %p263 = por %p261, %p262
      %p264 = scmp.ne.s32.totalorder %s255, %s256
      %p265 = scmp.eq.s32.totalorder %s30, 0
      %p266 = por %p264, %p265
      %p267 = scmp.ne.s32.totalorder %s255, %s256
      %p268 = scmp.eq.s32.totalorder %s31, 1
      %p269 = por %p267, %p268
      %p271 = scmp.ne.s32.totalorder %s256, %s270
      %p272 = scmp.eq.s32.totalorder %s31, 0
      %p273 = por %p271, %p272
      %s275 = sadd.s32 %s274, 1
      %p278 = scmp.eq.s32.totalorder %s25, 1
      %p279 = scmp.ne.s32.totalorder %s274, %s276
      %p280 = scmp.eq.s32.totalorder %s25, 0
      %p281 = por %p279, %p280
      %p282 = scmp.ne.s32.totalorder %s274, %s276
      %p283 = scmp.eq.s32.totalorder %s30, 1
      %p284 = por %p282, %p283
      %p285 = scmp.ne.s32.totalorder %s276, %s277
      %p286 = scmp.eq.s32.totalorder %s30, 0
      %p287 = por %p285, %p286
      %p288 = scmp.ne.s32.totalorder %s276, %s277
      %p289 = scmp.eq.s32.totalorder %s31, 1
      %p290 = por %p288, %p289
      %p292 = scmp.ne.s32.totalorder %s277, %s291
      %p293 = scmp.eq.s32.totalorder %s31, 0
      %p294 = por %p292, %p293
      %s296 = sadd.s32 %s295, 1
      %p299 = scmp.eq.s32.totalorder %s25, 1
      %p300 = scmp.ne.s32.totalorder %s295, %s297
      %p301 = scmp.eq.s32.totalorder %s25, 0
      %p302 = por %p300, %p301
      %p303 = scmp.ne.s32.totalorder %s295, %s297
      %p304 = scmp.eq.s32.totalorder %s30, 1
      %p305 = por %p303, %p304
      %p306 = scmp.ne.s32.totalorder %s297, %s298
      %p307 = scmp.eq.s32.totalorder %s30, 0
      %p308 = por %p306, %p307
      %p309 = scmp.ne.s32.totalorder %s297, %s298
      %p310 = scmp.eq.s32.totalorder %s31, 1
      %p311 = por %p309, %p310
      %p313 = scmp.ne.s32.totalorder %s298, %s312
      %p314 = scmp.eq.s32.totalorder %s31, 0
      %p315 = por %p313, %p314
      %s316 = ssub.s32 %s25, %s32
      %p317 = scmp.eq.s32.totalorder %s316, 0
      %s319 = sadd.s32 %s318, 1
      %s320 = scalar_select %p317, %s318, %s319
      %p323 = pneg %p317
      %p324 = scmp.eq.s32.totalorder %s25, 1
      %p325 = por %p323, %p324
      %p326 = scmp.ne.s32.totalorder %s318, %s321
      %p327 = scmp.eq.s32.totalorder %s25, 0
      %p328 = por %p326, %p327
      %p329 = scmp.ne.s32.totalorder %s318, %s321
      %p330 = scmp.eq.s32.totalorder %s30, 1
      %p331 = por %p329, %p330
      %p332 = scmp.ne.s32.totalorder %s321, %s322
      %p333 = scmp.eq.s32.totalorder %s30, 0
      %p334 = por %p332, %p333
      %p335 = scmp.ne.s32.totalorder %s321, %s322
      %p336 = scmp.eq.s32.totalorder %s31, 1
      %p337 = por %p335, %p336
      %p339 = scmp.ne.s32.totalorder %s322, %s338
      %p340 = scmp.eq.s32.totalorder %s31, 0
      %p341 = por %p339, %p340
      %p342 = scmp.le.s32.totalorder 1, %s25
      %p343 = scmp.lt.s32.totalorder %s25, 3
      %p344 = pnand %p342, %p343
      %p345 = pneg %p344
      // Predicated region
      $region9: #{tpu_custom_call.1} parent=5 // pred_check
        _
      $region10: #{tpu_custom_call.1} parent=5 // pred_check_branch
        %347 = sbr.rel (%p344) target = $region12
      $region11: #{tpu_custom_call.1} parent=5 // pred_region
        %s348 = ssub.s32 %s25, 1
        // Predicated region
        $region13: #{tpu_custom_call.1} parent=11 // pred_check
          %p349 = pneg %p98
        $region14: #{tpu_custom_call.1} parent=11 // pred_check_branch
          %351 = sbr.rel (%p349) target = $region16
        $region15: #{tpu_custom_call.1} parent=11 // pred_region
          %s353 = ssub.s32 768, 768
          %354 = vsyncadd [#allocation5], %s353
          %s355 = sshll.u32 [#allocation4], 4
          %s356 = int_to_ptr.vmem [resolvable:$true] %s355
          %361 = dma.hbm_to_vmem [thread:$0]  %s2, 768, %s356, [#allocation5], 128, 128, 8
        $region16: #{tpu_custom_call.1} parent=11 // pred_fallthru
          _
        // Predicated region
        $region17: #{tpu_custom_call.1} parent=11 // pred_check
          %p362 = pneg %p119
        $region18: #{tpu_custom_call.1} parent=11 // pred_check_branch
          %364 = sbr.rel (%p362) target = $region20
        $region19: #{tpu_custom_call.1} parent=11 // pred_region
          %s366 = ssub.s32 384, 384
          %367 = vsyncadd [#allocation5], %s366
          %s368 = sshll.u32 [#allocation6], 4
          %s369 = int_to_ptr.vmem [resolvable:$true] %s368
          %374 = dma.hbm_to_vmem [thread:$0]  %s3, 384, %s369, [#allocation5], 64, 64, 4
        $region20: #{tpu_custom_call.1} parent=11 // pred_fallthru
          _
        // Predicated region
        $region21: #{tpu_custom_call.1} parent=11 // pred_check
          %p375 = pneg %p140
        $region22: #{tpu_custom_call.1} parent=11 // pred_check_branch
          %377 = sbr.rel (%p375) target = $region24
        $region23: #{tpu_custom_call.1} parent=11 // pred_region
          %s379 = ssub.s32 3072, 3072
          %380 = vsyncadd [#allocation8], %s379
          %s381 = sshll.u32 [#allocation7], 4
          %s382 = int_to_ptr.vmem [resolvable:$true] %s381
          %387 = dma.hbm_to_vmem [thread:$0]  %s4, 3072, %s382, [#allocation8], 192, 192, 12
        $region24: #{tpu_custom_call.1} parent=11 // pred_fallthru
          _
        // Predicated region
        $region25: #{tpu_custom_call.1} parent=11 // pred_check
          %p388 = pneg %p161
        $region26: #{tpu_custom_call.1} parent=11 // pred_check_branch
          %390 = sbr.rel (%p388) target = $region28
        $region27: #{tpu_custom_call.1} parent=11 // pred_region
          _
        $region28: #{tpu_custom_call.1} parent=11 // pred_fallthru
          _
        // Predicated region
        $region29: #{tpu_custom_call.1} parent=11 // pred_check
          %p391 = pneg %p182
        $region30: #{tpu_custom_call.1} parent=11 // pred_check_branch
          %393 = sbr.rel (%p391) target = $region32
        $region31: #{tpu_custom_call.1} parent=11 // pred_region
          _
        $region32: #{tpu_custom_call.1} parent=11 // pred_fallthru
          _
        // Predicated region
        $region33: #{tpu_custom_call.1} parent=11 // pred_check
          %p394 = pneg %p203
        $region34: #{tpu_custom_call.1} parent=11 // pred_check_branch
          %396 = sbr.rel (%p394) target = $region36
        $region35: #{tpu_custom_call.1} parent=11 // pred_region
          %s398 = ssub.s32 1024, 1024
          %399 = vsyncadd [#allocation8], %s398
          %s400 = sshll.u32 [#allocation9], 4
          %s401 = int_to_ptr.vmem [resolvable:$true] %s400
          %406 = dma.hbm_to_vmem [thread:$0]  %s7, 1024, %s401, [#allocation8], 64, 64, 4
        $region36: #{tpu_custom_call.1} parent=11 // pred_fallthru
          _
        // Predicated region
        $region37: #{tpu_custom_call.1} parent=11 // pred_check
          %p407 = pneg %p224
        $region38: #{tpu_custom_call.1} parent=11 // pred_check_branch
          %409 = sbr.rel (%p407) target = $region40
        $region39: #{tpu_custom_call.1} parent=11 // pred_region
          _
        $region40: #{tpu_custom_call.1} parent=11 // pred_fallthru
          _
        // Predicated region
        $region41: #{tpu_custom_call.1} parent=11 // pred_check
          %p410 = pneg %p245
        $region42: #{tpu_custom_call.1} parent=11 // pred_check_branch
          %412 = sbr.rel (%p410) target = $region44
        $region43: #{tpu_custom_call.1} parent=11 // pred_region
          _
        $region44: #{tpu_custom_call.1} parent=11 // pred_fallthru
          _
        // Predicated region
        $region45: #{tpu_custom_call.1} parent=11 // pred_check
          %p413 = pneg %p266
        $region46: #{tpu_custom_call.1} parent=11 // pred_check_branch
          %415 = sbr.rel (%p413) target = $region48
        $region47: #{tpu_custom_call.1} parent=11 // pred_region
          _
        $region48: #{tpu_custom_call.1} parent=11 // pred_fallthru
          _
        // Predicated region
        $region49: #{tpu_custom_call.1} parent=11 // pred_check
          %p416 = pneg %p287
        $region50: #{tpu_custom_call.1} parent=11 // pred_check_branch
          %418 = sbr.rel (%p416) target = $region52
        $region51: #{tpu_custom_call.1} parent=11 // pred_region
          %s420 = ssub.s32 1024, 1024
          %421 = vsyncadd [#allocation11], %s420
          %s422 = sshll.u32 [#allocation10], 4
          %s423 = int_to_ptr.vmem [resolvable:$true] %s422
          %428 = dma.hbm_to_vmem [thread:$0]  %s11, 1024, %s423, [#allocation11], 64, 64, 4
        $region52: #{tpu_custom_call.1} parent=11 // pred_fallthru
          _
        // Predicated region
        $region53: #{tpu_custom_call.1} parent=11 // pred_check
          %p429 = pneg %p308
        $region54: #{tpu_custom_call.1} parent=11 // pred_check_branch
          %431 = sbr.rel (%p429) target = $region56
        $region55: #{tpu_custom_call.1} parent=11 // pred_region
          _
        $region56: #{tpu_custom_call.1} parent=11 // pred_fallthru
          _
      $region12: #{tpu_custom_call.1} parent=5 // pred_fallthru
        _
      %p432 = scmp.lt.s32.totalorder %s25, 2
      // Predicated region
      $region57: #{tpu_custom_call.1} parent=5 // pred_check
        %p433 = pneg %p432
      $region58: #{tpu_custom_call.1} parent=5 // pred_check_branch
        %435 = sbr.rel (%p433) target = $region60
      $region59: #{tpu_custom_call.1} parent=5 // pred_region
        // Predicated region
        $region61: #{tpu_custom_call.1} parent=59 // pred_check
          %p436 = pneg %p45
        $region62: #{tpu_custom_call.1} parent=59 // pred_check_branch
          %438 = sbr.rel (%p436) target = $region64
        $region63: #{tpu_custom_call.1} parent=59 // pred_region
          %p439 = scmp.lt.s32.totalorder %s25, 1
          %s440 = scalar_select %p439, %s25, 1
          %s441 = smul.addr %s440, 6
          %s442 = smul.addr %s441, 8
          %s443 = scalar_lea.vmem %s0, %s442
        $region64: #{tpu_custom_call.1} parent=59 // pred_fallthru
          _
        // Predicated region
        $region65: #{tpu_custom_call.1} parent=59 // pred_check
          %p444 = pneg %p71
        $region66: #{tpu_custom_call.1} parent=59 // pred_check_branch
          %446 = sbr.rel (%p444) target = $region68
        $region67: #{tpu_custom_call.1} parent=59 // pred_region
          %s447 = sand.u32 %s61, 1
          %s448 = scalar_lea.sflag [#allocation3], %s447
          %s449 = sand.u32 %s61, 1
          %s450 = smul.addr %s449, 16
          %s451 = scalar_lea.vmem [#allocation2], %s450
          %s453 = ssub.s32 256, 256
          %454 = vsyncadd %s448, %s453
          %s455 = smul.addr %s25, 2
          %s456 = smul.addr %s455, 128
          %s457 = scalar_lea.hbm %s1, %s456
          %s459 = sshll.u32 %s451, 4
          %s460 = int_to_ptr.vmem [resolvable:$true] %s459
          %462 = dma.hbm_to_vmem [thread:$0]  %s457, 256, %s460, %s448
        $region68: #{tpu_custom_call.1} parent=59 // pred_fallthru
          _
      $region60: #{tpu_custom_call.1} parent=5 // pred_fallthru
        _
      %p463 = scmp.le.s32.totalorder 1, %s25
      %p464 = scmp.lt.s32.totalorder %s25, 3
      %p465 = pnand %p463, %p464
      %p466 = pneg %p465
      // Predicated region
      $region69: #{tpu_custom_call.1} parent=5 // pred_check
        _
      $region70: #{tpu_custom_call.1} parent=5 // pred_check_branch
        %468 = sbr.rel (%p465) target = $region72
      $region71: #{tpu_custom_call.1} parent=5 // pred_region
        %s469 = ssub.s32 %s25, 1
        %s470 = sand.u32 %s64, 1
        %s471 = scalar_lea.sflag [#allocation3], %s470
        %s472 = sand.u32 %s64, 1
        %s473 = smul.addr %s472, 16
        %s474 = scalar_lea.vmem [#allocation2], %s473
        // Predicated region
        $region73: #{tpu_custom_call.1} parent=71 // pred_check
          %p475 = pneg %p77
        $region74: #{tpu_custom_call.1} parent=71 // pred_check_branch
          %477 = sbr.rel (%p475) target = $region76
        $region75: #{tpu_custom_call.1} parent=71 // pred_region
          %478 = dma.done %s471, 256
        $region76: #{tpu_custom_call.1} parent=71 // pred_fallthru
          _
        // Predicated region
        $region77: #{tpu_custom_call.1} parent=71 // pred_check
          %p479 = pneg %p98
        $region78: #{tpu_custom_call.1} parent=71 // pred_check_branch
          %481 = sbr.rel (%p479) target = $region80
        $region79: #{tpu_custom_call.1} parent=71 // pred_region
          %482 = dma.done [#allocation5], 768
        $region80: #{tpu_custom_call.1} parent=71 // pred_fallthru
          _
        // Predicated region
        $region81: #{tpu_custom_call.1} parent=71 // pred_check
          %p483 = pneg %p119
        $region82: #{tpu_custom_call.1} parent=71 // pred_check_branch
          %485 = sbr.rel (%p483) target = $region84
        $region83: #{tpu_custom_call.1} parent=71 // pred_region
          %486 = dma.done [#allocation5], 384
        $region84: #{tpu_custom_call.1} parent=71 // pred_fallthru
          _
        // Predicated region
        $region85: #{tpu_custom_call.1} parent=71 // pred_check
          %p487 = pneg %p140
        $region86: #{tpu_custom_call.1} parent=71 // pred_check_branch
          %489 = sbr.rel (%p487) target = $region88
        $region87: #{tpu_custom_call.1} parent=71 // pred_region
          %490 = dma.done [#allocation8], 3072
        $region88: #{tpu_custom_call.1} parent=71 // pred_fallthru
          _
        // Predicated region
        $region89: #{tpu_custom_call.1} parent=71 // pred_check
          %p491 = pneg %p203
        $region90: #{tpu_custom_call.1} parent=71 // pred_check_branch
          %493 = sbr.rel (%p491) target = $region92
        $region91: #{tpu_custom_call.1} parent=71 // pred_region
          %494 = dma.done [#allocation8], 1024
        $region92: #{tpu_custom_call.1} parent=71 // pred_fallthru
          _
        // Predicated region
        $region93: #{tpu_custom_call.1} parent=71 // pred_check
          %p495 = pneg %p287
        $region94: #{tpu_custom_call.1} parent=71 // pred_check_branch
          %497 = sbr.rel (%p495) target = $region96
        $region95: #{tpu_custom_call.1} parent=71 // pred_region
          %498 = dma.done [#allocation11], 1024
        $region96: #{tpu_custom_call.1} parent=71 // pred_fallthru
          _
        %p499 = scmp.lt.s32.totalorder %s30, 1
        %s500 = scalar_select %p499, %s30, 1
        %s501 = smul.addr %s500, 6
        %s502 = smul.addr %s501, 8
        %s503 = scalar_lea.vmem %s0, %s502
        %p504 = pneg %p51
        %p505 = pneg %p48
        %s506 = sand.u32 %s64, 1
        %s507 = scalar_lea.sflag [#allocation3], %s506
        %s508 = sand.u32 %s64, 1
        %s509 = smul.addr %s508, 16
        %s510 = scalar_lea.vmem [#allocation2], %s509
        %p511 = pneg %p77
        %p512 = pneg %p74
        %p513 = pneg %p98
        %p514 = pneg %p95
        %p515 = pneg %p119
        %p516 = pneg %p116
        %p517 = pneg %p140
        %p518 = pneg %p137
        %p519 = pneg %p161
        %p520 = pneg %p158
        %p521 = pneg %p182
        %p522 = pneg %p179
        %p523 = pneg %p203
        %p524 = pneg %p200
        %p525 = pneg %p224
        %p526 = pneg %p221
        %p527 = pneg %p245
        %p528 = pneg %p242
        %p529 = pneg %p266
        %p530 = pneg %p263
        %p531 = pneg %p287
        %p532 = pneg %p284
        %p533 = pneg %p308
        %p534 = pneg %p305
        %p535 = pneg %p334
        %p536 = pneg %p331
        %p537 = scmp.lt.s32.totalorder %s30, 1
        %s538 = scalar_select %p537, %s30, 1
        %s539 = smul.addr %s538, 4
        %s540 = scalar_lea.vmem %s13, %s539
        %p541 = scmp.lt.s32.totalorder %s30, 1
        %s542 = scalar_select %p541, %s30, 1
        %s543 = smul.addr %s542, 6
        %s544 = smul.addr %s543, 8
        %s545 = scalar_lea.vmem %s0, %s544
        %p546 = scmp.lt.s32.totalorder %s30, 1
        %s547 = scalar_select %p546, %s30, 1
        %s548 = smul.addr %s547, 4
        %s549 = scalar_lea.vmem %s13, %s548
        %v551 = vld [vmem:[%s545] sm:$0xff]
        %v552 = vld [vmem:[%s545 + $0x8] sm:$0xff]
        %v553 = vld [vmem:[%s545 + $0x10] sm:$0xff]
        %v554 = vld [vmem:[%s545 + $0x18] sm:$0xff]
        %v555 = vld [vmem:[%s545 + $0x20] sm:$0xff]
        %v556 = vld [vmem:[%s545 + $0x28] sm:$0xff]
        %v557 = vlaneseq
        %v558 = vand.u32 %v557, 127
        %559 = vset.pattern.permute.xlu0 0
        %560 = vperm.xlu0 %559, %v551
        %v561 = vpop.permute.xlu0 %560
        %562 = vset.pattern.permute.xlu0 0
        %563 = vperm.xlu0 %562, %v552
        %v564 = vpop.permute.xlu0 %563
        %565 = vset.pattern.permute.xlu0 0
        %566 = vperm.xlu0 %565, %v553
        %v567 = vpop.permute.xlu0 %566
        %568 = vset.pattern.permute.xlu0 0
        %569 = vperm.xlu0 %568, %v554
        %v570 = vpop.permute.xlu0 %569
        %571 = vset.pattern.permute.xlu0 0
        %572 = vperm.xlu0 %571, %v555
        %v573 = vpop.permute.xlu0 %572
        %574 = vset.pattern.permute.xlu0 0
        %575 = vperm.xlu0 %574, %v556
        %v576 = vpop.permute.xlu0 %575
        %vm577 = vcmp.eq.s32.totalorder %v561, %v558
        %vm578 = vcmp.eq.s32.totalorder %v564, %v558
        %vm579 = vcmp.eq.s32.totalorder %v567, %v558
        %vm580 = vcmp.eq.s32.totalorder %v570, %v558
        %vm581 = vcmp.eq.s32.totalorder %v573, %v558
        %vm582 = vcmp.eq.s32.totalorder %v576, %v558
        %v583 = vsel %vm577, 1, 0
        %v584 = vsel %vm578, 1, 0
        %v585 = vsel %vm579, 1, 0
        %v586 = vsel %vm580, 1, 0
        %v587 = vsel %vm581, 1, 0
        %v588 = vsel %vm582, 1, 0
        %v589 = vcvt.s32.f32 %v583
        %v590 = vcvt.s32.f32 %v584
        %v591 = vcvt.s32.f32 %v585
        %v592 = vcvt.s32.f32 %v586
        %v593 = vcvt.s32.f32 %v587
        %v594 = vcvt.s32.f32 %v588
        %v595 = vpack.c.bf16 %v590, %v589
        %v596 = vpack.c.bf16 %v592, %v591
        %v597 = vpack.c.bf16 %v594, %v593
        %v598 = vld [vmem:[#allocation7] sm:$0xff]
        %v599 = vld [vmem:[#allocation7 + $0x8] sm:$0xf]
        %v600 = vld [vmem:[#allocation7 + $0xc] sm:$0xff]
        %v601 = vld [vmem:[#allocation7 + $0x14] sm:$0xf]
        %v602 = vld [vmem:[#allocation7 + $0x18] sm:$0xff]
        %v603 = vld [vmem:[#allocation7 + $0x20] sm:$0xf]
        %v604 = vld [vmem:[#allocation7 + $0x24] sm:$0xff]
        %v605 = vld [vmem:[#allocation7 + $0x2c] sm:$0xf]
        %v606 = vld [vmem:[#allocation7 + $0x30] sm:$0xff]
        %v607 = vld [vmem:[#allocation7 + $0x38] sm:$0xf]
        %v608 = vld [vmem:[#allocation7 + $0x3c] sm:$0xff]
        %v609 = vld [vmem:[#allocation7 + $0x44] sm:$0xf]
        %v610 = vld [vmem:[#allocation7 + $0x48] sm:$0xff]
        %v611 = vld [vmem:[#allocation7 + $0x50] sm:$0xf]
        %v612 = vld [vmem:[#allocation7 + $0x54] sm:$0xff]
        %v613 = vld [vmem:[#allocation7 + $0x5c] sm:$0xf]
        %v614 = vld [vmem:[#allocation7 + $0x60] sm:$0xff]
        %v615 = vld [vmem:[#allocation7 + $0x68] sm:$0xf]
        %v616 = vld [vmem:[#allocation7 + $0x6c] sm:$0xff]
        %v617 = vld [vmem:[#allocation7 + $0x74] sm:$0xf]
        %v618 = vld [vmem:[#allocation7 + $0x78] sm:$0xff]
        %v619 = vld [vmem:[#allocation7 + $0x80] sm:$0xf]
        %v620 = vld [vmem:[#allocation7 + $0x84] sm:$0xff]
        %v621 = vld [vmem:[#allocation7 + $0x8c] sm:$0xf]
        %v622 = vld [vmem:[#allocation7 + $0x90] sm:$0xff]
        %v623 = vld [vmem:[#allocation7 + $0x98] sm:$0xf]
        %v624 = vld [vmem:[#allocation7 + $0x9c] sm:$0xff]
        %v625 = vld [vmem:[#allocation7 + $0xa4] sm:$0xf]
        %v626 = vld [vmem:[#allocation7 + $0xa8] sm:$0xff]
        %v627 = vld [vmem:[#allocation7 + $0xb0] sm:$0xf]
        %v628 = vld [vmem:[#allocation7 + $0xb4] sm:$0xff]
        %v629 = vld [vmem:[#allocation7 + $0xbc] sm:$0xf]
        %v662 = vunpack.c.l.b16 %v598
        %v663 = vunpack.c.h.b16 %v598
        %v664 = vunpack.c.l.b16 %v599
        %v665 = vunpack.c.l.b16 %v600
        %v666 = vunpack.c.h.b16 %v600
        %v667 = vunpack.c.l.b16 %v601
        %v668 = vunpack.c.l.b16 %v602
        %v669 = vunpack.c.h.b16 %v602
        %v670 = vunpack.c.l.b16 %v603
        %v671 = vunpack.c.l.b16 %v604
        %v672 = vunpack.c.h.b16 %v604
        %v673 = vunpack.c.l.b16 %v605
        %v674 = vunpack.c.l.b16 %v606
        %v675 = vunpack.c.h.b16 %v606
        %v676 = vunpack.c.l.b16 %v607
        %v677 = vunpack.c.l.b16 %v608
        %v678 = vunpack.c.h.b16 %v608
        %v679 = vunpack.c.l.b16 %v609
        %v680 = vunpack.c.l.b16 %v610
        %v681 = vunpack.c.h.b16 %v610
        %v682 = vunpack.c.l.b16 %v611
        %v683 = vunpack.c.l.b16 %v612
        %v684 = vunpack.c.h.b16 %v612
        %v685 = vunpack.c.l.b16 %v613
        %v686 = vunpack.c.l.b16 %v614
        %v687 = vunpack.c.h.b16 %v614
        %v688 = vunpack.c.l.b16 %v615
        %v689 = vunpack.c.l.b16 %v616
        %v690 = vunpack.c.h.b16 %v616
        %v691 = vunpack.c.l.b16 %v617
        %v692 = vunpack.c.l.b16 %v618
        %v693 = vunpack.c.h.b16 %v618
        %v694 = vunpack.c.l.b16 %v619
        %v695 = vunpack.c.l.b16 %v620
        %v696 = vunpack.c.h.b16 %v620
        %v697 = vunpack.c.l.b16 %v621
        %v698 = vunpack.c.l.b16 %v622
        %v699 = vunpack.c.h.b16 %v622
        %v700 = vunpack.c.l.b16 %v623
        %v701 = vunpack.c.l.b16 %v624
        %v702 = vunpack.c.h.b16 %v624
        %v703 = vunpack.c.l.b16 %v625
        %v704 = vunpack.c.l.b16 %v626
        %v705 = vunpack.c.h.b16 %v626
        %v706 = vunpack.c.l.b16 %v627
        %v707 = vunpack.c.l.b16 %v628
        %v708 = vunpack.c.h.b16 %v628
        %v709 = vunpack.c.l.b16 %v629
        %v710 = vpack.c.b16 %v665, %v662
        %v711 = vpack.c.b16 %v666, %v663
        %v712 = vpack.c.b16 %v667, %v664
        %v713 = vpack.c.b16 %v671, %v668
        %v714 = vpack.c.b16 %v672, %v669
        %v715 = vpack.c.b16 %v673, %v670
        %v716 = vpack.c.b16 %v677, %v674
        %v717 = vpack.c.b16 %v678, %v675
        %v718 = vpack.c.b16 %v679, %v676
        %v719 = vpack.c.b16 %v683, %v680
        %v720 = vpack.c.b16 %v684, %v681
        %v721 = vpack.c.b16 %v685, %v682
        %v722 = vpack.c.b16 %v689, %v686
        %v723 = vpack.c.b16 %v690, %v687
        %v724 = vpack.c.b16 %v691, %v688
        %v725 = vpack.c.b16 %v695, %v692
        %v726 = vpack.c.b16 %v696, %v693
        %v727 = vpack.c.b16 %v697, %v694
        %v728 = vpack.c.b16 %v701, %v698
        %v729 = vpack.c.b16 %v702, %v699
        %v730 = vpack.c.b16 %v703, %v700
        %v731 = vpack.c.b16 %v707, %v704
        %v732 = vpack.c.b16 %v708, %v705
        %v733 = vpack.c.b16 %v709, %v706
        %758 = vmatprep.subr.bf16.mxu0 %v711
        %759 = vmatpush1.bf16.msra.mxu0 %v710
        %760 = vmatprep.subr.bf16.mxu0 %v714
        %761 = vmatpush1.bf16.msra.mxu0 %v713
        %762 = vmatprep.subr.bf16.mxu0 %v717
        %763 = vmatpush1.bf16.msra.mxu0 %v716
        %764 = vmatprep.subr.bf16.mxu0 %v720
        %765 = vmatpush1.bf16.msra.mxu0 %v719
        %766 = vmatprep.subr.bf16.mxu0 %v723
        %767 = vmatpush1.bf16.msra.mxu0 %v722
        %768 = vmatprep.subr.bf16.mxu0 %v726
        %769 = vmatpush1.bf16.msra.mxu0 %v725
        %770 = vmatprep.subr.bf16.mxu0 %v729
        %771 = vmatpush1.bf16.msra.mxu0 %v728
        %772 = vmatprep.subr.bf16.mxu0 %v732
        %773 = vmatpush1.bf16.msra.mxu0 %v731
        %774 = vmatprep.subr.bf16.mxu0 0
        %775 = vmatpush1.bf16.msra.mxu0 0
        %776 = vmatprep.subr.bf16.mxu0 0
        %777 = vmatpush1.bf16.msra.mxu0 0
        %778 = vmatprep.subr.bf16.mxu0 0
        %779 = vmatpush1.bf16.msra.mxu0 0
        %780 = vmatprep.subr.bf16.mxu0 0
        %781 = vmatpush1.bf16.msra.mxu0 0
        %782 = vmatprep.subr.bf16.mxu0 0
        %783 = vmatpush1.bf16.msra.mxu0 0
        %784 = vmatprep.subr.bf16.mxu0 0
        %785 = vmatpush1.bf16.msra.mxu0 0
        %786 = vmatprep.subr.bf16.mxu0 0
        %787 = vmatpush1.bf16.msra.mxu0 0
        %788 = vmatprep.subr.bf16.mxu0 0
        %789 = vmatpush1.bf16.msra.mxu0 0
        %790 = vmatprep.mubr.bf16.mxu0 0
        %791 = vmatmul.mubr.bf16.gmra.mrb[0].mxu0 %v595
        %v792 = vpop.f32.mrb[0].mxu0
        %v793 = vadd.f32 0.0, %v792
        %v794 = vpop.f32.mrb[0].mxu0
        %v795 = vadd.f32 0.0, %v794
        %v796 = vpop.f32.mrb[0].mxu0
        %v797 = vadd.f32 0.0, %v796
        %v798 = vpop.f32.mrb[0].mxu0
        %v799 = vadd.f32 0.0, %v798
        %800 = vmatprep.mubr.bf16.mxu0 0
        %801 = vmatmul.mubr.bf16.gmra.mrb[0].mxu0 %v596
        %v802 = vpop.f32.mrb[0].mxu0
        %v803 = vadd.f32 0.0, %v802
        %v804 = vpop.f32.mrb[0].mxu0
        %v805 = vadd.f32 0.0, %v804
        %v806 = vpop.f32.mrb[0].mxu0
        %v807 = vadd.f32 0.0, %v806
        %v808 = vpop.f32.mrb[0].mxu0
        %v809 = vadd.f32 0.0, %v808
        %810 = vmatprep.mubr.bf16.mxu0 0
        %811 = vmatmul.mubr.bf16.gmra.mrb[0].mxu0 %v597
        %v812 = vpop.f32.mrb[0].mxu0
        %v813 = vadd.f32 0.0, %v812
        %v814 = vpop.f32.mrb[0].mxu0
        %v815 = vadd.f32 0.0, %v814
        %v816 = vpop.f32.mrb[0].mxu0
        %v817 = vadd.f32 0.0, %v816
        %v818 = vpop.f32.mrb[0].mxu0
        %v819 = vadd.f32 0.0, %v818
        %820 = vdwg.mxu0
        %821 = vmatprep.subr.bf16.mxu0 0
        %822 = vmatpush1.bf16.msra.mxu0 %v712
        %823 = vmatprep.subr.bf16.mxu0 0
        %824 = vmatpush1.bf16.msra.mxu0 %v715
        %825 = vmatprep.subr.bf16.mxu0 0
        %826 = vmatpush1.bf16.msra.mxu0 %v718
        %827 = vmatprep.subr.bf16.mxu0 0
        %828 = vmatpush1.bf16.msra.mxu0 %v721
        %829 = vmatprep.subr.bf16.mxu0 0
        %830 = vmatpush1.bf16.msra.mxu0 %v724
        %831 = vmatprep.subr.bf16.mxu0 0
        %832 = vmatpush1.bf16.msra.mxu0 %v727
        %833 = vmatprep.subr.bf16.mxu0 0
        %834 = vmatpush1.bf16.msra.mxu0 %v730
        %835 = vmatprep.subr.bf16.mxu0 0
        %836 = vmatpush1.bf16.msra.mxu0 %v733
        %837 = vmatprep.subr.bf16.mxu0 0
        %838 = vmatpush1.bf16.msra.mxu0 0
        %839 = vmatprep.subr.bf16.mxu0 0
        %840 = vmatpush1.bf16.msra.mxu0 0
        %841 = vmatprep.subr.bf16.mxu0 0
        %842 = vmatpush1.bf16.msra.mxu0 0
        %843 = vmatprep.subr.bf16.mxu0 0
        %844 = vmatpush1.bf16.msra.mxu0 0
        %845 = vmatprep.subr.bf16.mxu0 0
        %846 = vmatpush1.bf16.msra.mxu0 0
        %847 = vmatprep.subr.bf16.mxu0 0
        %848 = vmatpush1.bf16.msra.mxu0 0
        %849 = vmatprep.subr.bf16.mxu0 0
        %850 = vmatpush1.bf16.msra.mxu0 0
        %851 = vmatprep.subr.bf16.mxu0 0
        %852 = vmatpush1.bf16.msra.mxu0 0
        %853 = vmatprep.mubr.bf16.mxu0 0
        %854 = vmatmul.mubr.bf16.gmra.mrb[0].mxu0 %v595
        %v855 = vpop.f32.mrb[0].mxu0
        %v856 = vadd.f32 0.0, %v855
        %v857 = vpop.f32.mrb[0].mxu0
        %v858 = vpop.f32.mrb[0].mxu0
        %v859 = vadd.f32 0.0, %v858
        %v860 = vpop.f32.mrb[0].mxu0
        %861 = vmatprep.mubr.bf16.mxu0 0
        %862 = vmatmul.mubr.bf16.gmra.mrb[0].mxu0 %v596
        %v863 = vpop.f32.mrb[0].mxu0
        %v864 = vadd.f32 0.0, %v863
        %v865 = vpop.f32.mrb[0].mxu0
        %v866 = vpop.f32.mrb[0].mxu0
        %v867 = vadd.f32 0.0, %v866
        %v868 = vpop.f32.mrb[0].mxu0
        %869 = vmatprep.mubr.bf16.mxu0 0
        %870 = vmatmul.mubr.bf16.gmra.mrb[0].mxu0 %v597
        %v871 = vpop.f32.mrb[0].mxu0
        %v872 = vadd.f32 0.0, %v871
        %v873 = vpop.f32.mrb[0].mxu0
        %v874 = vpop.f32.mrb[0].mxu0
        %v875 = vadd.f32 0.0, %v874
        %v876 = vpop.f32.mrb[0].mxu0
        %877 = vdwg.mxu0
        %v878 = vcvt.s32.f32 %v551
        %v879 = vcvt.s32.f32 %v552
        %v880 = vcvt.s32.f32 %v553
        %v881 = vcvt.s32.f32 %v554
        %v882 = vcvt.s32.f32 %v555
        %v883 = vcvt.s32.f32 %v556
        %v884 = vmul.f32 %v878, 0.007874016
        %v885 = vmul.f32 %v879, 0.007874016
        %v886 = vmul.f32 %v880, 0.007874016
        %v887 = vmul.f32 %v881, 0.007874016
        %v888 = vmul.f32 %v882, 0.007874016
        %v889 = vmul.f32 %v883, 0.007874016
        %v890 = vmul.f32 %v884, %v884
        %v891 = vmul.f32 %v885, %v885
        %v892 = vmul.f32 %v886, %v886
        %v893 = vmul.f32 %v887, %v887
        %v894 = vmul.f32 %v888, %v888
        %v895 = vmul.f32 %v889, %v889
        %897 = vset.pattern.permute.xlu0 1
        %898 = vperm.xlu0 %897, %v890
        %v899 = vpop.permute.xlu0 %898
        %902 = vset.pattern.permute.xlu0 1
        %903 = vperm.xlu0 %902, %v891
        %v904 = vpop.permute.xlu0 %903
        %907 = vset.pattern.permute.xlu0 1
        %908 = vperm.xlu0 %907, %v892
        %v909 = vpop.permute.xlu0 %908
        %912 = vset.pattern.permute.xlu0 1
        %913 = vperm.xlu0 %912, %v893
        %v914 = vpop.permute.xlu0 %913
        %917 = vset.pattern.permute.xlu0 1
        %918 = vperm.xlu0 %917, %v894
        %v919 = vpop.permute.xlu0 %918
        %922 = vset.pattern.permute.xlu0 1
        %923 = vperm.xlu0 %922, %v895
        %v924 = vpop.permute.xlu0 %923
        %v926 = vmul.f32 %v795, %v899
        %v927 = vmul.f32 %v799, %v904
        %v928 = vmul.f32 %v805, %v909
        %v929 = vmul.f32 %v809, %v914
        %v930 = vmul.f32 %v815, %v919
        %v931 = vmul.f32 %v819, %v924
        %v932 = vlaneseq
        %v933 = vshrl.u32 %v932, 7
        %v934 = vadd.s32 %v933, 8
        %v935 = vadd.s32 %v933, 16
        %v936 = vadd.s32 %v933, 24
        %v937 = vadd.s32 %v933, 32
        %v938 = vadd.s32 %v933, 40
        %v939 = vmul.u32 %v558, 16
        %vm940 = vcmp.ge.s32.totalorder %v933, %v939
        %vm941 = vcmp.ge.s32.totalorder %v934, %v939
        %vm942 = vcmp.ge.s32.totalorder %v935, %v939
        %vm943 = vcmp.ge.s32.totalorder %v936, %v939
        %vm944 = vcmp.ge.s32.totalorder %v937, %v939
        %vm945 = vcmp.ge.s32.totalorder %v938, %v939
        %v946 = vadd.s32 %v939, 16
        %vm947 = vcmp.lt.s32.totalorder %v933, %v946
        %vm948 = vcmp.lt.s32.totalorder %v934, %v946
        %vm949 = vcmp.lt.s32.totalorder %v935, %v946
        %vm950 = vcmp.lt.s32.totalorder %v936, %v946
        %vm951 = vcmp.lt.s32.totalorder %v937, %v946
        %vm952 = vcmp.lt.s32.totalorder %v938, %v946
        %vm953 = vmand %vm940, %vm947
        %vm954 = vmand %vm941, %vm948
        %vm955 = vmand %vm942, %vm949
        %vm956 = vmand %vm943, %vm950
        %vm957 = vmand %vm944, %vm951
        %vm958 = vmand %vm945, %vm952
        %v959 = vsel %vm953, 1, 0
        %v960 = vsel %vm954, 1, 0
        %v961 = vsel %vm955, 1, 0
        %v962 = vsel %vm956, 1, 0
        %v963 = vsel %vm957, 1, 0
        %v964 = vsel %vm958, 1, 0
        %v965 = vcvt.s32.f32 %v959
        %v966 = vcvt.s32.f32 %v960
        %v967 = vcvt.s32.f32 %v961
        %v968 = vcvt.s32.f32 %v962
        %v969 = vcvt.s32.f32 %v963
        %v970 = vcvt.s32.f32 %v964
        %v971 = vpack.c.bf16 %v966, %v965
        %v972 = vpack.c.bf16 %v968, %v967
        %v973 = vpack.c.bf16 %v970, %v969
        %v974 = vld [vmem:[%s474] sm:$0xff]
        %v975 = vld [vmem:[%s474 + $0x8] sm:$0xff]
        %v976 = vpack.c.bf16 %v974, %v974
        %v977 = vpack.c.bf16 %v975, %v975
        %vm978 = vcmask 64512
        %v980 = vsel %vm978, %v971, 0
        %v983 = vsel %vm978, %v972, 0
        %v986 = vsel %vm978, %v973, 0
        %vm988 = vcmask 1043456
        %v990 = vsel %vm988, %v976, 0
        %v993 = vsel %vm988, %v977, 0
        %995 = vmatprep.subr.bf16.mxu0 %v993
        %996 = vmatpush1.bf16.msra.mxu0 %v990
        %997 = vmatprep.subr.bf16.mxu0 0
        %998 = vmatpush1.bf16.msra.mxu0 0
        %999 = vmatprep.subr.bf16.mxu0 0
        %1000 = vmatpush1.bf16.msra.mxu0 0
        %1001 = vmatprep.subr.bf16.mxu0 0
        %1002 = vmatpush1.bf16.msra.mxu0 0
        %1003 = vmatprep.subr.bf16.mxu0 0
        %1004 = vmatpush1.bf16.msra.mxu0 0
        %1005 = vmatprep.subr.bf16.mxu0 0
        %1006 = vmatpush1.bf16.msra.mxu0 0
        %1007 = vmatprep.subr.bf16.mxu0 0
        %1008 = vmatpush1.bf16.msra.mxu0 0
        %1009 = vmatprep.subr.bf16.mxu0 0
        %1010 = vmatpush1.bf16.msra.mxu0 0
        %1011 = vmatprep.subr.bf16.mxu0 0
        %1012 = vmatpush1.bf16.msra.mxu0 0
        %1013 = vmatprep.subr.bf16.mxu0 0
        %1014 = vmatpush1.bf16.msra.mxu0 0
        %1015 = vmatprep.subr.bf16.mxu0 0
        %1016 = vmatpush1.bf16.msra.mxu0 0
        %1017 = vmatprep.subr.bf16.mxu0 0
        %1018 = vmatpush1.bf16.msra.mxu0 0
        %1019 = vmatprep.subr.bf16.mxu0 0
        %1020 = vmatpush1.bf16.msra.mxu0 0
        %1021 = vmatprep.subr.bf16.mxu0 0
        %1022 = vmatpush1.bf16.msra.mxu0 0
        %1023 = vmatprep.subr.bf16.mxu0 0
        %1024 = vmatpush1.bf16.msra.mxu0 0
        %1025 = vmatprep.subr.bf16.mxu0 0
        %1026 = vmatpush1.bf16.msra.mxu0 0
        %1027 = vmatprep.mubr.bf16.mxu0 0
        %1028 = vmatmul.mubr.bf16.gmra.mrb[0].mxu0 %v980
        %v1029 = vpop.f32.mrb[0].mxu0
        %v1030 = vadd.f32 0.0, %v1029
        %v1031 = vpop.f32.mrb[0].mxu0
        %v1032 = vadd.f32 0.0, %v1031
        %v1033 = vpop.f32.mrb[0].mxu0
        %v1034 = vadd.f32 0.0, %v1033
        %v1035 = vpop.f32.mrb[0].mxu0
        %v1036 = vadd.f32 0.0, %v1035
        %1037 = vmatprep.mubr.bf16.mxu0 0
        %1038 = vmatmul.mubr.bf16.gmra.mrb[0].mxu0 %v983
        %v1039 = vpop.f32.mrb[0].mxu0
        %v1040 = vadd.f32 0.0, %v1039
        %v1041 = vpop.f32.mrb[0].mxu0
        %v1042 = vadd.f32 0.0, %v1041
        %v1043 = vpop.f32.mrb[0].mxu0
        %v1044 = vadd.f32 0.0, %v1043
        %v1045 = vpop.f32.mrb[0].mxu0
        %v1046 = vadd.f32 0.0, %v1045
        %1047 = vmatprep.mubr.bf16.mxu0 0
        %1048 = vmatmul.mubr.bf16.gmra.mrb[0].mxu0 %v986
        %v1049 = vpop.f32.mrb[0].mxu0
        %v1050 = vadd.f32 0.0, %v1049
        %v1051 = vpop.f32.mrb[0].mxu0
        %v1052 = vadd.f32 0.0, %v1051
        %v1053 = vpop.f32.mrb[0].mxu0
        %v1054 = vadd.f32 0.0, %v1053
        %v1055 = vpop.f32.mrb[0].mxu0
        %v1056 = vadd.f32 0.0, %v1055
        %1057 = vdwg.mxu0
        %v1058 = vpack.c.bf16 %v797, %v793
        %v1059 = vpack.c.bf16 %v927, %v926
        %v1060 = vpack.c.bf16 %v807, %v803
        %v1061 = vpack.c.bf16 %v929, %v928
        %v1062 = vpack.c.bf16 %v817, %v813
        %v1063 = vpack.c.bf16 %v931, %v930
        %v1064 = vld [vmem:[#allocation6] sm:$0xf]
        %v1065 = vld [vmem:[#allocation6 + $0x4] sm:$0xf]
        %v1066 = vld [vmem:[#allocation6 + $0x8] sm:$0xf]
        %v1067 = vld [vmem:[#allocation6 + $0xc] sm:$0xf]
        %v1068 = vld [vmem:[#allocation6 + $0x10] sm:$0xf]
        %v1069 = vld [vmem:[#allocation6 + $0x14] sm:$0xf]
        %v1076 = vunpack.c.l.b16 %v1064
        %v1077 = vunpack.c.l.b16 %v1065
        %v1078 = vunpack.c.l.b16 %v1066
        %v1079 = vunpack.c.l.b16 %v1067
        %v1080 = vunpack.c.l.b16 %v1068
        %v1081 = vunpack.c.l.b16 %v1069
        %v1082 = vpack.c.b16 %v1077, %v1076
        %v1083 = vpack.c.b16 %v1079, %v1078
        %v1084 = vpack.c.b16 %v1081, %v1080
        %vm1085 = vcmask 392192
        %v1087 = vsel %vm1085, %v1082, 0
        %v1090 = vsel %vm1085, %v1083, 0
        %v1093 = vsel %vm1085, %v1084, 0
        %1095 = vmatprep.subr.bf16.mxu0 %v1059
        %1096 = vmatpush1.bf16.msra.mxu0 %v1058
        %1097 = vmatprep.subr.bf16.mxu0 %v1061
        %1098 = vmatpush1.bf16.msra.mxu0 %v1060
        %1099 = vmatprep.subr.bf16.mxu0 %v1063
        %1100 = vmatpush1.bf16.msra.mxu0 %v1062
        %1101 = vmatprep.subr.bf16.mxu0 0
        %1102 = vmatpush1.bf16.msra.mxu0 0
        %1103 = vmatprep.subr.bf16.mxu0 0
        %1104 = vmatpush1.bf16.msra.mxu0 0
        %1105 = vmatprep.subr.bf16.mxu0 0
        %1106 = vmatpush1.bf16.msra.mxu0 0
        %1107 = vmatprep.subr.bf16.mxu0 0
        %1108 = vmatpush1.bf16.msra.mxu0 0
        %1109 = vmatprep.subr.bf16.mxu0 0
        %1110 = vmatpush1.bf16.msra.mxu0 0
        %1111 = vmatprep.subr.bf16.mxu0 0
        %1112 = vmatpush1.bf16.msra.mxu0 0
        %1113 = vmatprep.subr.bf16.mxu0 0
        %1114 = vmatpush1.bf16.msra.mxu0 0
        %1115 = vmatprep.subr.bf16.mxu0 0
        %1116 = vmatpush1.bf16.msra.mxu0 0
        %1117 = vmatprep.subr.bf16.mxu0 0
        %1118 = vmatpush1.bf16.msra.mxu0 0
        %1119 = vmatprep.subr.bf16.mxu0 0
        %1120 = vmatpush1.bf16.msra.mxu0 0
        %1121 = vmatprep.subr.bf16.mxu0 0
        %1122 = vmatpush1.bf16.msra.mxu0 0
        %1123 = vmatprep.subr.bf16.mxu0 0
        %1124 = vmatpush1.bf16.msra.mxu0 0
        %1125 = vmatprep.subr.bf16.mxu0 0
        %1126 = vmatpush1.bf16.msra.mxu0 0
        %1127 = vmatprep.mubr.bf16.mxu0 0
        %1128 = vmatmul.mubr.bf16.gmra.mrb[0].mxu0 %v1087
        %v1129 = vpop.f32.mrb[0].mxu0
        %v1130 = vadd.f32 0.0, %v1129
        %v1131 = vpop.f32.mrb[0].mxu0
        %v1132 = vadd.f32 0.0, %v1131
        %v1133 = vpop.f32.mrb[0].mxu0
        %v1134 = vadd.f32 0.0, %v1133
        %v1135 = vpop.f32.mrb[0].mxu0
        %v1136 = vadd.f32 0.0, %v1135
        %1137 = vmatprep.mubr.bf16.mxu0 0
        %1138 = vmatmul.mubr.bf16.gmra.mrb[0].mxu0 %v1090
        %v1139 = vpop.f32.mrb[0].mxu0
        %v1140 = vadd.f32 0.0, %v1139
        %v1141 = vpop.f32.mrb[0].mxu0
        %v1142 = vadd.f32 0.0, %v1141
        %v1143 = vpop.f32.mrb[0].mxu0
        %v1144 = vadd.f32 0.0, %v1143
        %v1145 = vpop.f32.mrb[0].mxu0
        %v1146 = vadd.f32 0.0, %v1145
        %1147 = vmatprep.mubr.bf16.mxu0 0
        %1148 = vmatmul.mubr.bf16.gmra.mrb[0].mxu0 %v1093
        %v1149 = vpop.f32.mrb[0].mxu0
        %v1150 = vadd.f32 0.0, %v1149
        %v1151 = vpop.f32.mrb[0].mxu0
        %v1152 = vadd.f32 0.0, %v1151
        %v1153 = vpop.f32.mrb[0].mxu0
        %v1154 = vadd.f32 0.0, %v1153
        %v1155 = vpop.f32.mrb[0].mxu0
        %v1156 = vadd.f32 0.0, %v1155
        %1157 = vdwg.mxu0
        %1158 = vmatprep.subr.bf16.mxu0 0
        %1159 = vmatpush1.bf16.msra.mxu0 %v595
        %1160 = vmatprep.subr.bf16.mxu0 0
        %1161 = vmatpush1.bf16.msra.mxu0 %v596
        %1162 = vmatprep.subr.bf16.mxu0 0
        %1163 = vmatpush1.bf16.msra.mxu0 %v597
        %1164 = vmatprep.subr.bf16.mxu0 0
        %1165 = vmatpush1.bf16.msra.mxu0 0
        %1166 = vmatprep.subr.bf16.mxu0 0
        %1167 = vmatpush1.bf16.msra.mxu0 0
        %1168 = vmatprep.subr.bf16.mxu0 0
        %1169 = vmatpush1.bf16.msra.mxu0 0
        %1170 = vmatprep.subr.bf16.mxu0 0
        %1171 = vmatpush1.bf16.msra.mxu0 0
        %1172 = vmatprep.subr.bf16.mxu0 0
        %1173 = vmatpush1.bf16.msra.mxu0 0
        %1174 = vmatprep.subr.bf16.mxu0 0
        %1175 = vmatpush1.bf16.msra.mxu0 0
        %1176 = vmatprep.subr.bf16.mxu0 0
        %1177 = vmatpush1.bf16.msra.mxu0 0
        %1178 = vmatprep.subr.bf16.mxu0 0
        %1179 = vmatpush1.bf16.msra.mxu0 0
        %1180 = vmatprep.subr.bf16.mxu0 0
        %1181 = vmatpush1.bf16.msra.mxu0 0
        %1182 = vmatprep.subr.bf16.mxu0 0
        %1183 = vmatpush1.bf16.msra.mxu0 0
        %1184 = vmatprep.subr.bf16.mxu0 0
        %1185 = vmatpush1.bf16.msra.mxu0 0
        %1186 = vmatprep.subr.bf16.mxu0 0
        %1187 = vmatpush1.bf16.msra.mxu0 0
        %1188 = vmatprep.subr.bf16.mxu0 0
        %1189 = vmatpush1.bf16.msra.mxu0 0
        %1190 = vmatprep.mubr.bf16.mxu0 0
        %1191 = vmatmul.mubr.bf16.gmra.mrb[0].mxu0 %v1087
        %v1192 = vpop.f32.mrb[0].mxu0
        %v1193 = vadd.f32 0.0, %v1192
        %v1194 = vpop.f32.mrb[0].mxu0
        %v1195 = vpop.f32.mrb[0].mxu0
        %v1196 = vadd.f32 0.0, %v1195
        %v1197 = vpop.f32.mrb[0].mxu0
        %1198 = vmatprep.mubr.bf16.mxu0 0
        %1199 = vmatmul.mubr.bf16.gmra.mrb[0].mxu0 %v1090
        %v1200 = vpop.f32.mrb[0].mxu0
        %v1201 = vadd.f32 0.0, %v1200
        %v1202 = vpop.f32.mrb[0].mxu0
        %v1203 = vpop.f32.mrb[0].mxu0
        %v1204 = vadd.f32 0.0, %v1203
        %v1205 = vpop.f32.mrb[0].mxu0
        %1206 = vmatprep.mubr.bf16.mxu0 0
        %1207 = vmatmul.mubr.bf16.gmra.mrb[0].mxu0 %v1093
        %v1208 = vpop.f32.mrb[0].mxu0
        %v1209 = vadd.f32 0.0, %v1208
        %v1210 = vpop.f32.mrb[0].mxu0
        %v1211 = vpop.f32.mrb[0].mxu0
        %v1212 = vadd.f32 0.0, %v1211
        %v1213 = vpop.f32.mrb[0].mxu0
        %1214 = vdwg.mxu0
        %v1215 = vsub.f32 %v1132, %v926
        %v1216 = vsub.f32 %v1136, %v927
        %v1217 = vsub.f32 %v1142, %v928
        %v1218 = vsub.f32 %v1146, %v929
        %v1219 = vsub.f32 %v1152, %v930
        %v1220 = vsub.f32 %v1156, %v931
        %v1221 = vsub.f32 %v1193, %v589
        %v1222 = vsub.f32 %v1196, %v590
        %v1223 = vsub.f32 %v1201, %v591
        %v1224 = vsub.f32 %v1204, %v592
        %v1225 = vsub.f32 %v1209, %v593
        %v1226 = vsub.f32 %v1212, %v594
        %vm1227 = vcmp.gt.f32.partialorder %v1221, 0.5
        %vm1228 = vcmp.gt.f32.partialorder %v1222, 0.5
        %vm1229 = vcmp.gt.f32.partialorder %v1223, 0.5
        %vm1230 = vcmp.gt.f32.partialorder %v1224, 0.5
        %vm1231 = vcmp.gt.f32.partialorder %v1225, 0.5
        %vm1232 = vcmp.gt.f32.partialorder %v1226, 0.5
        %v1233 = vadd.f32 %v1215, %v1130
        %v1234 = vadd.f32 %v1216, %v1134
        %v1235 = vadd.f32 %v1217, %v1140
        %v1236 = vadd.f32 %v1218, %v1144
        %v1237 = vadd.f32 %v1219, %v1150
        %v1238 = vadd.f32 %v1220, %v1154
        %v1239 = vld [vmem:[#allocation4] sm:$0xff]
        %v1240 = vld [vmem:[#allocation4 + $0x8] sm:$0xff]
        %v1241 = vld [vmem:[#allocation4 + $0x10] sm:$0xff]
        %v1242 = vld [vmem:[#allocation4 + $0x18] sm:$0xff]
        %v1243 = vld [vmem:[#allocation4 + $0x20] sm:$0xff]
        %v1244 = vld [vmem:[#allocation4 + $0x28] sm:$0xff]
        %v1245 = vadd.f32 %v1233, %v1239
        %v1246 = vadd.f32 %v1234, %v1240
        %v1247 = vadd.f32 %v1235, %v1241
        %v1248 = vadd.f32 %v1236, %v1242
        %v1249 = vadd.f32 %v1237, %v1243
        %v1250 = vadd.f32 %v1238, %v1244
        %v1251 = vsub.f32 %v1245, %v793
        %v1252 = vsub.f32 %v1246, %v797
        %v1253 = vsub.f32 %v1247, %v803
        %v1254 = vsub.f32 %v1248, %v807
        %v1255 = vsub.f32 %v1249, %v813
        %v1256 = vsub.f32 %v1250, %v817
        %v1257 = vmul.f32 %v1251, 11.313708
        %v1258 = vmul.f32 %v1252, 11.313708
        %v1259 = vmul.f32 %v1253, 11.313708
        %v1260 = vmul.f32 %v1254, 11.313708
        %v1261 = vmul.f32 %v1255, 11.313708
        %v1262 = vmul.f32 %v1256, 11.313708
        %v1263 = vadd.f32 %v1030, %v1257
        %v1264 = vadd.f32 %v1034, %v1258
        %v1265 = vadd.f32 %v1040, %v1259
        %v1266 = vadd.f32 %v1044, %v1260
        %v1267 = vadd.f32 %v1050, %v1261
        %v1268 = vadd.f32 %v1054, %v1262
        %v1269 = vpack.c.bf16 %v1264, %v1263
        %v1270 = vpack.c.bf16 %v1266, %v1265
        %v1271 = vpack.c.bf16 %v1268, %v1267
        %v1272 = vadd.f32 %v1245, %v856
        %v1273 = vadd.f32 %v1246, %v859
        %v1274 = vadd.f32 %v1247, %v864
        %v1275 = vadd.f32 %v1248, %v867
        %v1276 = vadd.f32 %v1249, %v872
        %v1277 = vadd.f32 %v1250, %v875
        %v1278 = vmul.f32 %v1272, 11.313708
        %v1279 = vmul.f32 %v1273, 11.313708
        %v1280 = vmul.f32 %v1274, 11.313708
        %v1281 = vmul.f32 %v1275, 11.313708
        %v1282 = vmul.f32 %v1276, 11.313708
        %v1283 = vmul.f32 %v1277, 11.313708
        %v1284 = vadd.f32 %v1030, %v1278
        %v1285 = vadd.f32 %v1034, %v1279
        %v1286 = vadd.f32 %v1040, %v1280
        %v1287 = vadd.f32 %v1044, %v1281
        %v1288 = vadd.f32 %v1050, %v1282
        %v1289 = vadd.f32 %v1054, %v1283
        %v1290 = vpack.c.bf16 %v1285, %v1284
        %v1291 = vpack.c.bf16 %v1287, %v1286
        %v1292 = vpack.c.bf16 %v1289, %v1288
        %v1293 = vld [vmem:[%s5] sm:$0xf]
        %v1294 = vld [vmem:[%s5 + $0x4] sm:$0xf]
        %v1295 = vld [vmem:[%s5 + $0x8] sm:$0xf]
        %v1296 = vld [vmem:[%s5 + $0xc] sm:$0xf]
        %v1297 = vld [vmem:[%s5 + $0x10] sm:$0xf]
        %v1298 = vld [vmem:[%s5 + $0x14] sm:$0xf]
        %v1299 = vld [vmem:[%s5 + $0x18] sm:$0xf]
        %v1300 = vld [vmem:[%s5 + $0x1c] sm:$0xf]
        %v1301 = vld [vmem:[%s5 + $0x20] sm:$0xf]
        %v1302 = vld [vmem:[%s5 + $0x24] sm:$0xf]
        %v1303 = vld [vmem:[%s5 + $0x28] sm:$0xf]
        %v1304 = vld [vmem:[%s5 + $0x2c] sm:$0xf]
        %v1305 = vld [vmem:[%s5 + $0x30] sm:$0xf]
        %v1306 = vld [vmem:[%s5 + $0x34] sm:$0xf]
        %v1307 = vld [vmem:[%s5 + $0x38] sm:$0xf]
        %v1308 = vld [vmem:[%s5 + $0x3c] sm:$0xf]
        %v1309 = vld [vmem:[%s6] sm:$0x1]
        %v1311 = vlaneseq
        %v1312 = vshrl.u32 %v1311, 7
        %v1313 = vsub.s32 0, %v1312
        %v1314 = vrot.slane %v1309, %v1313
        %v1332 = vunpack.c.l.b16 %v1293
        %v1333 = vunpack.c.l.b16 %v1294
        %v1334 = vunpack.c.l.b16 %v1295
        %v1335 = vunpack.c.l.b16 %v1296
        %v1336 = vunpack.c.l.b16 %v1297
        %v1337 = vunpack.c.l.b16 %v1298
        %v1338 = vunpack.c.l.b16 %v1299
        %v1339 = vunpack.c.l.b16 %v1300
        %v1340 = vunpack.c.l.b16 %v1301
        %v1341 = vunpack.c.l.b16 %v1302
        %v1342 = vunpack.c.l.b16 %v1303
        %v1343 = vunpack.c.l.b16 %v1304
        %v1344 = vunpack.c.l.b16 %v1305
        %v1345 = vunpack.c.l.b16 %v1306
        %v1346 = vunpack.c.l.b16 %v1307
        %v1347 = vunpack.c.l.b16 %v1308
        %v1348 = vpack.c.b16 %v1333, %v1332
        %v1349 = vpack.c.b16 %v1335, %v1334
        %v1350 = vpack.c.b16 %v1337, %v1336
        %v1351 = vpack.c.b16 %v1339, %v1338
        %v1352 = vpack.c.b16 %v1341, %v1340
        %v1353 = vpack.c.b16 %v1343, %v1342
        %v1354 = vpack.c.b16 %v1345, %v1344
        %v1355 = vpack.c.b16 %v1347, %v1346
        %1364 = vmatprep.subr.bf16.mxu0 0
        %1365 = vmatpush1.bf16.msra.mxu0 %v1348
        %1366 = vmatprep.subr.bf16.mxu0 0
        %1367 = vmatpush1.bf16.msra.mxu0 %v1349
        %1368 = vmatprep.subr.bf16.mxu0 0
        %1369 = vmatpush1.bf16.msra.mxu0 %v1350
        %1370 = vmatprep.subr.bf16.mxu0 0
        %1371 = vmatpush1.bf16.msra.mxu0 %v1351
        %1372 = vmatprep.subr.bf16.mxu0 0
        %1373 = vmatpush1.bf16.msra.mxu0 %v1352
        %1374 = vmatprep.subr.bf16.mxu0 0
        %1375 = vmatpush1.bf16.msra.mxu0 %v1353
        %1376 = vmatprep.subr.bf16.mxu0 0
        %1377 = vmatpush1.bf16.msra.mxu0 %v1354
        %1378 = vmatprep.subr.bf16.mxu0 0
        %1379 = vmatpush1.bf16.msra.mxu0 %v1355
        %1380 = vmatprep.subr.bf16.mxu0 0
        %1381 = vmatpush1.bf16.msra.mxu0 0
        %1382 = vmatprep.subr.bf16.mxu0 0
        %1383 = vmatpush1.bf16.msra.mxu0 0
        %1384 = vmatprep.subr.bf16.mxu0 0
        %1385 = vmatpush1.bf16.msra.mxu0 0
        %1386 = vmatprep.subr.bf16.mxu0 0
        %1387 = vmatpush1.bf16.msra.mxu0 0
        %1388 = vmatprep.subr.bf16.mxu0 0
        %1389 = vmatpush1.bf16.msra.mxu0 0
        %1390 = vmatprep.subr.bf16.mxu0 0
        %1391 = vmatpush1.bf16.msra.mxu0 0
        %1392 = vmatprep.subr.bf16.mxu0 0
        %1393 = vmatpush1.bf16.msra.mxu0 0
        %1394 = vmatprep.subr.bf16.mxu0 0
        %1395 = vmatpush1.bf16.msra.mxu0 0
        %1396 = vmatprep.mubr.bf16.mxu0 0
        %1397 = vmatmul.mubr.bf16.gmra.mrb[0].mxu0 %v1269
        %v1398 = vpop.f32.mrb[0].mxu0
        %v1399 = vadd.f32 %v1314, %v1398
        %v1400 = vpop.f32.mrb[0].mxu0
        %v1401 = vpop.f32.mrb[0].mxu0
        %v1402 = vadd.f32 %v1314, %v1401
        %v1403 = vpop.f32.mrb[0].mxu0
        %1404 = vmatprep.mubr.bf16.mxu0 0
        %1405 = vmatmul.mubr.bf16.gmra.mrb[0].mxu0 %v1270
        %v1406 = vpop.f32.mrb[0].mxu0
        %v1407 = vadd.f32 %v1314, %v1406
        %v1408 = vpop.f32.mrb[0].mxu0
        %v1409 = vpop.f32.mrb[0].mxu0
        %v1410 = vadd.f32 %v1314, %v1409
        %v1411 = vpop.f32.mrb[0].mxu0
        %1412 = vmatprep.mubr.bf16.mxu0 0
        %1413 = vmatmul.mubr.bf16.gmra.mrb[0].mxu0 %v1271
        %v1414 = vpop.f32.mrb[0].mxu0
        %v1415 = vadd.f32 %v1314, %v1414
        %v1416 = vpop.f32.mrb[0].mxu0
        %v1417 = vpop.f32.mrb[0].mxu0
        %v1418 = vadd.f32 %v1314, %v1417
        %v1419 = vpop.f32.mrb[0].mxu0
        %1420 = vdwg.mxu0
        %v1421 = vmax.f32 %v1399, 0.0
        %v1422 = vmax.f32 %v1402, 0.0
        %v1423 = vmax.f32 %v1407, 0.0
        %v1424 = vmax.f32 %v1410, 0.0
        %v1425 = vmax.f32 %v1415, 0.0
        %v1426 = vmax.f32 %v1418, 0.0
        %v1427 = vpack.c.bf16 %v1422, %v1421
        %v1428 = vpack.c.bf16 %v1424, %v1423
        %v1429 = vpack.c.bf16 %v1426, %v1425
        %v1430 = vld [vmem:[#allocation9] sm:$0xf]
        %v1431 = vld [vmem:[#allocation9 + $0x4] sm:$0xf]
        %v1432 = vld [vmem:[#allocation9 + $0x8] sm:$0xf]
        %v1433 = vld [vmem:[#allocation9 + $0xc] sm:$0xf]
        %v1434 = vld [vmem:[#allocation9 + $0x10] sm:$0xf]
        %v1435 = vld [vmem:[#allocation9 + $0x14] sm:$0xf]
        %v1436 = vld [vmem:[#allocation9 + $0x18] sm:$0xf]
        %v1437 = vld [vmem:[#allocation9 + $0x1c] sm:$0xf]
        %v1438 = vld [vmem:[#allocation9 + $0x20] sm:$0xf]
        %v1439 = vld [vmem:[#allocation9 + $0x24] sm:$0xf]
        %v1440 = vld [vmem:[#allocation9 + $0x28] sm:$0xf]
        %v1441 = vld [vmem:[#allocation9 + $0x2c] sm:$0xf]
        %v1442 = vld [vmem:[#allocation9 + $0x30] sm:$0xf]
        %v1443 = vld [vmem:[#allocation9 + $0x34] sm:$0xf]
        %v1444 = vld [vmem:[#allocation9 + $0x38] sm:$0xf]
        %v1445 = vld [vmem:[#allocation9 + $0x3c] sm:$0xf]
        %v1446 = vld [vmem:[%s8] sm:$0x1]
        %v1448 = vlaneseq
        %v1449 = vshrl.u32 %v1448, 7
        %v1450 = vsub.s32 0, %v1449
        %v1451 = vrot.slane %v1446, %v1450
        %v1469 = vunpack.c.l.b16 %v1430
        %v1470 = vunpack.c.l.b16 %v1431
        %v1471 = vunpack.c.l.b16 %v1432
        %v1472 = vunpack.c.l.b16 %v1433
        %v1473 = vunpack.c.l.b16 %v1434
        %v1474 = vunpack.c.l.b16 %v1435
        %v1475 = vunpack.c.l.b16 %v1436
        %v1476 = vunpack.c.l.b16 %v1437
        %v1477 = vunpack.c.l.b16 %v1438
        %v1478 = vunpack.c.l.b16 %v1439
        %v1479 = vunpack.c.l.b16 %v1440
        %v1480 = vunpack.c.l.b16 %v1441
        %v1481 = vunpack.c.l.b16 %v1442
        %v1482 = vunpack.c.l.b16 %v1443
        %v1483 = vunpack.c.l.b16 %v1444
        %v1484 = vunpack.c.l.b16 %v1445
        %v1485 = vpack.c.b16 %v1470, %v1469
        %v1486 = vpack.c.b16 %v1472, %v1471
        %v1487 = vpack.c.b16 %v1474, %v1473
        %v1488 = vpack.c.b16 %v1476, %v1475
        %v1489 = vpack.c.b16 %v1478, %v1477
        %v1490 = vpack.c.b16 %v1480, %v1479
        %v1491 = vpack.c.b16 %v1482, %v1481
        %v1492 = vpack.c.b16 %v1484, %v1483
        %1501 = vmatprep.subr.bf16.mxu0 0
        %1502 = vmatpush1.bf16.msra.mxu0 %v1485
        %1503 = vmatprep.subr.bf16.mxu0 0
        %1504 = vmatpush1.bf16.msra.mxu0 %v1486
        %1505 = vmatprep.subr.bf16.mxu0 0
        %1506 = vmatpush1.bf16.msra.mxu0 %v1487
        %1507 = vmatprep.subr.bf16.mxu0 0
        %1508 = vmatpush1.bf16.msra.mxu0 %v1488
        %1509 = vmatprep.subr.bf16.mxu0 0
        %1510 = vmatpush1.bf16.msra.mxu0 %v1489
        %1511 = vmatprep.subr.bf16.mxu0 0
        %1512 = vmatpush1.bf16.msra.mxu0 %v1490
        %1513 = vmatprep.subr.bf16.mxu0 0
        %1514 = vmatpush1.bf16.msra.mxu0 %v1491
        %1515 = vmatprep.subr.bf16.mxu0 0
        %1516 = vmatpush1.bf16.msra.mxu0 %v1492
        %1517 = vmatprep.subr.bf16.mxu0 0
        %1518 = vmatpush1.bf16.msra.mxu0 0
        %1519 = vmatprep.subr.bf16.mxu0 0
        %1520 = vmatpush1.bf16.msra.mxu0 0
        %1521 = vmatprep.subr.bf16.mxu0 0
        %1522 = vmatpush1.bf16.msra.mxu0 0
        %1523 = vmatprep.subr.bf16.mxu0 0
        %1524 = vmatpush1.bf16.msra.mxu0 0
        %1525 = vmatprep.subr.bf16.mxu0 0
        %1526 = vmatpush1.bf16.msra.mxu0 0
        %1527 = vmatprep.subr.bf16.mxu0 0
        %1528 = vmatpush1.bf16.msra.mxu0 0
        %1529 = vmatprep.subr.bf16.mxu0 0
        %1530 = vmatpush1.bf16.msra.mxu0 0
        %1531 = vmatprep.subr.bf16.mxu0 0
        %1532 = vmatpush1.bf16.msra.mxu0 0
        %1533 = vmatprep.mubr.bf16.mxu0 0
        %1534 = vmatmul.mubr.bf16.gmra.mrb[0].mxu0 %v1427
        %v1535 = vpop.f32.mrb[0].mxu0
        %v1536 = vadd.f32 %v1451, %v1535
        %v1537 = vpop.f32.mrb[0].mxu0
        %v1538 = vpop.f32.mrb[0].mxu0
        %v1539 = vadd.f32 %v1451, %v1538
        %v1540 = vpop.f32.mrb[0].mxu0
        %1541 = vmatprep.mubr.bf16.mxu0 0
        %1542 = vmatmul.mubr.bf16.gmra.mrb[0].mxu0 %v1428
        %v1543 = vpop.f32.mrb[0].mxu0
        %v1544 = vadd.f32 %v1451, %v1543
        %v1545 = vpop.f32.mrb[0].mxu0
        %v1546 = vpop.f32.mrb[0].mxu0
        %v1547 = vadd.f32 %v1451, %v1546
        %v1548 = vpop.f32.mrb[0].mxu0
        %1549 = vmatprep.mubr.bf16.mxu0 0
        %1550 = vmatmul.mubr.bf16.gmra.mrb[0].mxu0 %v1429
        %v1551 = vpop.f32.mrb[0].mxu0
        %v1552 = vadd.f32 %v1451, %v1551
        %v1553 = vpop.f32.mrb[0].mxu0
        %v1554 = vpop.f32.mrb[0].mxu0
        %v1555 = vadd.f32 %v1451, %v1554
        %v1556 = vpop.f32.mrb[0].mxu0
        %1557 = vdwg.mxu0
        %v1558 = vld [vmem:[%s9] sm:$0xf]
        %v1559 = vld [vmem:[%s9 + $0x4] sm:$0xf]
        %v1560 = vld [vmem:[%s9 + $0x8] sm:$0xf]
        %v1561 = vld [vmem:[%s9 + $0xc] sm:$0xf]
        %v1562 = vld [vmem:[%s9 + $0x10] sm:$0xf]
        %v1563 = vld [vmem:[%s9 + $0x14] sm:$0xf]
        %v1564 = vld [vmem:[%s9 + $0x18] sm:$0xf]
        %v1565 = vld [vmem:[%s9 + $0x1c] sm:$0xf]
        %v1566 = vld [vmem:[%s9 + $0x20] sm:$0xf]
        %v1567 = vld [vmem:[%s9 + $0x24] sm:$0xf]
        %v1568 = vld [vmem:[%s9 + $0x28] sm:$0xf]
        %v1569 = vld [vmem:[%s9 + $0x2c] sm:$0xf]
        %v1570 = vld [vmem:[%s9 + $0x30] sm:$0xf]
        %v1571 = vld [vmem:[%s9 + $0x34] sm:$0xf]
        %v1572 = vld [vmem:[%s9 + $0x38] sm:$0xf]
        %v1573 = vld [vmem:[%s9 + $0x3c] sm:$0xf]
        %v1574 = vld [vmem:[%s10] sm:$0x1]
        %v1576 = vlaneseq
        %v1577 = vshrl.u32 %v1576, 7
        %v1578 = vsub.s32 0, %v1577
        %v1579 = vrot.slane %v1574, %v1578
        %v1597 = vunpack.c.l.b16 %v1558
        %v1598 = vunpack.c.l.b16 %v1559
        %v1599 = vunpack.c.l.b16 %v1560
        %v1600 = vunpack.c.l.b16 %v1561
        %v1601 = vunpack.c.l.b16 %v1562
        %v1602 = vunpack.c.l.b16 %v1563
        %v1603 = vunpack.c.l.b16 %v1564
        %v1604 = vunpack.c.l.b16 %v1565
        %v1605 = vunpack.c.l.b16 %v1566
        %v1606 = vunpack.c.l.b16 %v1567
        %v1607 = vunpack.c.l.b16 %v1568
        %v1608 = vunpack.c.l.b16 %v1569
        %v1609 = vunpack.c.l.b16 %v1570
        %v1610 = vunpack.c.l.b16 %v1571
        %v1611 = vunpack.c.l.b16 %v1572
        %v1612 = vunpack.c.l.b16 %v1573
        %v1613 = vpack.c.b16 %v1598, %v1597
        %v1614 = vpack.c.b16 %v1600, %v1599
        %v1615 = vpack.c.b16 %v1602, %v1601
        %v1616 = vpack.c.b16 %v1604, %v1603
        %v1617 = vpack.c.b16 %v1606, %v1605
        %v1618 = vpack.c.b16 %v1608, %v1607
        %v1619 = vpack.c.b16 %v1610, %v1609
        %v1620 = vpack.c.b16 %v1612, %v1611
        %1629 = vmatprep.subr.bf16.mxu0 0
        %1630 = vmatpush1.bf16.msra.mxu0 %v1613
        %1631 = vmatprep.subr.bf16.mxu0 0
        %1632 = vmatpush1.bf16.msra.mxu0 %v1614
        %1633 = vmatprep.subr.bf16.mxu0 0
        %1634 = vmatpush1.bf16.msra.mxu0 %v1615
        %1635 = vmatprep.subr.bf16.mxu0 0
        %1636 = vmatpush1.bf16.msra.mxu0 %v1616
        %1637 = vmatprep.subr.bf16.mxu0 0
        %1638 = vmatpush1.bf16.msra.mxu0 %v1617
        %1639 = vmatprep.subr.bf16.mxu0 0
        %1640 = vmatpush1.bf16.msra.mxu0 %v1618
        %1641 = vmatprep.subr.bf16.mxu0 0
        %1642 = vmatpush1.bf16.msra.mxu0 %v1619
        %1643 = vmatprep.subr.bf16.mxu0 0
        %1644 = vmatpush1.bf16.msra.mxu0 %v1620
        %1645 = vmatprep.subr.bf16.mxu0 0
        %1646 = vmatpush1.bf16.msra.mxu0 0
        %1647 = vmatprep.subr.bf16.mxu0 0
        %1648 = vmatpush1.bf16.msra.mxu0 0
        %1649 = vmatprep.subr.bf16.mxu0 0
        %1650 = vmatpush1.bf16.msra.mxu0 0
        %1651 = vmatprep.subr.bf16.mxu0 0
        %1652 = vmatpush1.bf16.msra.mxu0 0
        %1653 = vmatprep.subr.bf16.mxu0 0
        %1654 = vmatpush1.bf16.msra.mxu0 0
        %1655 = vmatprep.subr.bf16.mxu0 0
        %1656 = vmatpush1.bf16.msra.mxu0 0
        %1657 = vmatprep.subr.bf16.mxu0 0
        %1658 = vmatpush1.bf16.msra.mxu0 0
        %1659 = vmatprep.subr.bf16.mxu0 0
        %1660 = vmatpush1.bf16.msra.mxu0 0
        %1661 = vmatprep.mubr.bf16.mxu0 0
        %1662 = vmatmul.mubr.bf16.gmra.mrb[0].mxu0 %v1290
        %v1663 = vpop.f32.mrb[0].mxu0
        %v1664 = vadd.f32 %v1579, %v1663
        %v1665 = vpop.f32.mrb[0].mxu0
        %v1666 = vpop.f32.mrb[0].mxu0
        %v1667 = vadd.f32 %v1579, %v1666
        %v1668 = vpop.f32.mrb[0].mxu0
        %1669 = vmatprep.mubr.bf16.mxu0 0
        %1670 = vmatmul.mubr.bf16.gmra.mrb[0].mxu0 %v1291
        %v1671 = vpop.f32.mrb[0].mxu0
        %v1672 = vadd.f32 %v1579, %v1671
        %v1673 = vpop.f32.mrb[0].mxu0
        %v1674 = vpop.f32.mrb[0].mxu0
        %v1675 = vadd.f32 %v1579, %v1674
        %v1676 = vpop.f32.mrb[0].mxu0
        %1677 = vmatprep.mubr.bf16.mxu0 0
        %1678 = vmatmul.mubr.bf16.gmra.mrb[0].mxu0 %v1292
        %v1679 = vpop.f32.mrb[0].mxu0
        %v1680 = vadd.f32 %v1579, %v1679
        %v1681 = vpop.f32.mrb[0].mxu0
        %v1682 = vpop.f32.mrb[0].mxu0
        %v1683 = vadd.f32 %v1579, %v1682
        %v1684 = vpop.f32.mrb[0].mxu0
        %1685 = vdwg.mxu0
        %v1686 = vmax.f32 %v1664, 0.0
        %v1687 = vmax.f32 %v1667, 0.0
        %v1688 = vmax.f32 %v1672, 0.0
        %v1689 = vmax.f32 %v1675, 0.0
        %v1690 = vmax.f32 %v1680, 0.0
        %v1691 = vmax.f32 %v1683, 0.0
        %v1692 = vpack.c.bf16 %v1687, %v1686
        %v1693 = vpack.c.bf16 %v1689, %v1688
        %v1694 = vpack.c.bf16 %v1691, %v1690
        %v1695 = vld [vmem:[#allocation10] sm:$0xf]
        %v1696 = vld [vmem:[#allocation10 + $0x4] sm:$0xf]
        %v1697 = vld [vmem:[#allocation10 + $0x8] sm:$0xf]
        %v1698 = vld [vmem:[#allocation10 + $0xc] sm:$0xf]
        %v1699 = vld [vmem:[#allocation10 + $0x10] sm:$0xf]
        %v1700 = vld [vmem:[#allocation10 + $0x14] sm:$0xf]
        %v1701 = vld [vmem:[#allocation10 + $0x18] sm:$0xf]
        %v1702 = vld [vmem:[#allocation10 + $0x1c] sm:$0xf]
        %v1703 = vld [vmem:[#allocation10 + $0x20] sm:$0xf]
        %v1704 = vld [vmem:[#allocation10 + $0x24] sm:$0xf]
        %v1705 = vld [vmem:[#allocation10 + $0x28] sm:$0xf]
        %v1706 = vld [vmem:[#allocation10 + $0x2c] sm:$0xf]
        %v1707 = vld [vmem:[#allocation10 + $0x30] sm:$0xf]
        %v1708 = vld [vmem:[#allocation10 + $0x34] sm:$0xf]
        %v1709 = vld [vmem:[#allocation10 + $0x38] sm:$0xf]
        %v1710 = vld [vmem:[#allocation10 + $0x3c] sm:$0xf]
        %v1711 = vld [vmem:[%s12] sm:$0x1]
        %v1713 = vlaneseq
        %v1714 = vshrl.u32 %v1713, 7
        %v1715 = vsub.s32 0, %v1714
        %v1716 = vrot.slane %v1711, %v1715
        %v1734 = vunpack.c.l.b16 %v1695
        %v1735 = vunpack.c.l.b16 %v1696
        %v1736 = vunpack.c.l.b16 %v1697
        %v1737 = vunpack.c.l.b16 %v1698
        %v1738 = vunpack.c.l.b16 %v1699
        %v1739 = vunpack.c.l.b16 %v1700
        %v1740 = vunpack.c.l.b16 %v1701
        %v1741 = vunpack.c.l.b16 %v1702
        %v1742 = vunpack.c.l.b16 %v1703
        %v1743 = vunpack.c.l.b16 %v1704
        %v1744 = vunpack.c.l.b16 %v1705
        %v1745 = vunpack.c.l.b16 %v1706
        %v1746 = vunpack.c.l.b16 %v1707
        %v1747 = vunpack.c.l.b16 %v1708
        %v1748 = vunpack.c.l.b16 %v1709
        %v1749 = vunpack.c.l.b16 %v1710
        %v1750 = vpack.c.b16 %v1735, %v1734
        %v1751 = vpack.c.b16 %v1737, %v1736
        %v1752 = vpack.c.b16 %v1739, %v1738
        %v1753 = vpack.c.b16 %v1741, %v1740
        %v1754 = vpack.c.b16 %v1743, %v1742
        %v1755 = vpack.c.b16 %v1745, %v1744
        %v1756 = vpack.c.b16 %v1747, %v1746
        %v1757 = vpack.c.b16 %v1749, %v1748
        %1766 = vmatprep.subr.bf16.mxu0 0
        %1767 = vmatpush1.bf16.msra.mxu0 %v1750
        %1768 = vmatprep.subr.bf16.mxu0 0
        %1769 = vmatpush1.bf16.msra.mxu0 %v1751
        %1770 = vmatprep.subr.bf16.mxu0 0
        %1771 = vmatpush1.bf16.msra.mxu0 %v1752
        %1772 = vmatprep.subr.bf16.mxu0 0
        %1773 = vmatpush1.bf16.msra.mxu0 %v1753
        %1774 = vmatprep.subr.bf16.mxu0 0
        %1775 = vmatpush1.bf16.msra.mxu0 %v1754
        %1776 = vmatprep.subr.bf16.mxu0 0
        %1777 = vmatpush1.bf16.msra.mxu0 %v1755
        %1778 = vmatprep.subr.bf16.mxu0 0
        %1779 = vmatpush1.bf16.msra.mxu0 %v1756
        %1780 = vmatprep.subr.bf16.mxu0 0
        %1781 = vmatpush1.bf16.msra.mxu0 %v1757
        %1782 = vmatprep.subr.bf16.mxu0 0
        %1783 = vmatpush1.bf16.msra.mxu0 0
        %1784 = vmatprep.subr.bf16.mxu0 0
        %1785 = vmatpush1.bf16.msra.mxu0 0
        %1786 = vmatprep.subr.bf16.mxu0 0
        %1787 = vmatpush1.bf16.msra.mxu0 0
        %1788 = vmatprep.subr.bf16.mxu0 0
        %1789 = vmatpush1.bf16.msra.mxu0 0
        %1790 = vmatprep.subr.bf16.mxu0 0
        %1791 = vmatpush1.bf16.msra.mxu0 0
        %1792 = vmatprep.subr.bf16.mxu0 0
        %1793 = vmatpush1.bf16.msra.mxu0 0
        %1794 = vmatprep.subr.bf16.mxu0 0
        %1795 = vmatpush1.bf16.msra.mxu0 0
        %1796 = vmatprep.subr.bf16.mxu0 0
        %1797 = vmatpush1.bf16.msra.mxu0 0
        %1798 = vmatprep.mubr.bf16.mxu0 0
        %1799 = vmatmul.mubr.bf16.gmra.mrb[0].mxu0 %v1692
        %v1800 = vpop.f32.mrb[0].mxu0
        %v1801 = vadd.f32 %v1716, %v1800
        %v1802 = vpop.f32.mrb[0].mxu0
        %v1803 = vpop.f32.mrb[0].mxu0
        %v1804 = vadd.f32 %v1716, %v1803
        %v1805 = vpop.f32.mrb[0].mxu0
        %1806 = vmatprep.mubr.bf16.mxu0 0
        %1807 = vmatmul.mubr.bf16.gmra.mrb[0].mxu0 %v1693
        %v1808 = vpop.f32.mrb[0].mxu0
        %v1809 = vadd.f32 %v1716, %v1808
        %v1810 = vpop.f32.mrb[0].mxu0
        %v1811 = vpop.f32.mrb[0].mxu0
        %v1812 = vadd.f32 %v1716, %v1811
        %v1813 = vpop.f32.mrb[0].mxu0
        %1814 = vmatprep.mubr.bf16.mxu0 0
        %1815 = vmatmul.mubr.bf16.gmra.mrb[0].mxu0 %v1694
        %v1816 = vpop.f32.mrb[0].mxu0
        %v1817 = vadd.f32 %v1716, %v1816
        %v1818 = vpop.f32.mrb[0].mxu0
        %v1819 = vpop.f32.mrb[0].mxu0
        %v1820 = vadd.f32 %v1716, %v1819
        %v1821 = vpop.f32.mrb[0].mxu0
        %1822 = vdwg.mxu0
        %v1823 = vsel %vm1227, -1e+20, %v1536
        %v1824 = vsel %vm1228, -1e+20, %v1539
        %v1825 = vsel %vm1229, -1e+20, %v1544
        %v1826 = vsel %vm1230, -1e+20, %v1547
        %v1827 = vsel %vm1231, -1e+20, %v1552
        %v1828 = vsel %vm1232, -1e+20, %v1555
        %1829 = vmax.xlane.f32.xlu0 %v1823
        %v1830 = vpop.xlane.xlu0 %1829
        %1831 = vmax.xlane.f32.xlu0 %v1824
        %v1832 = vpop.xlane.xlu0 %1831
        %1833 = vmax.xlane.f32.xlu0 %v1825
        %v1834 = vpop.xlane.xlu0 %1833
        %1835 = vmax.xlane.f32.xlu0 %v1826
        %v1836 = vpop.xlane.xlu0 %1835
        %1837 = vmax.xlane.f32.xlu0 %v1827
        %v1838 = vpop.xlane.xlu0 %1837
        %1839 = vmax.xlane.f32.xlu0 %v1828
        %v1840 = vpop.xlane.xlu0 %1839
        %v1841 = vsub.f32 %v1823, %v1830
        %v1842 = vsub.f32 %v1824, %v1832
        %v1843 = vsub.f32 %v1825, %v1834
        %v1844 = vsub.f32 %v1826, %v1836
        %v1845 = vsub.f32 %v1827, %v1838
        %v1846 = vsub.f32 %v1828, %v1840
        %v1847 = vmul.f32 %v1841, 1.442695
        %v1848 = vpow.pop %v1847
        %v1849 = vmul.f32 %v1842, 1.442695
        %v1850 = vpow.pop %v1849
        %v1851 = vmul.f32 %v1843, 1.442695
        %v1852 = vpow.pop %v1851
        %v1853 = vmul.f32 %v1844, 1.442695
        %v1854 = vpow.pop %v1853
        %v1855 = vmul.f32 %v1845, 1.442695
        %v1856 = vpow.pop %v1855
        %v1857 = vmul.f32 %v1846, 1.442695
        %v1858 = vpow.pop %v1857
        %1859 = vadd.xlane.f32.xlu0 %v1848
        %v1860 = vpop.xlane.xlu0 %1859
        %1861 = vadd.xlane.f32.xlu0 %v1850
        %v1862 = vpop.xlane.xlu0 %1861
        %1863 = vadd.xlane.f32.xlu0 %v1852
        %v1864 = vpop.xlane.xlu0 %1863
        %1865 = vadd.xlane.f32.xlu0 %v1854
        %v1866 = vpop.xlane.xlu0 %1865
        %1867 = vadd.xlane.f32.xlu0 %v1856
        %v1868 = vpop.xlane.xlu0 %1867
        %1869 = vadd.xlane.f32.xlu0 %v1858
        %v1870 = vpop.xlane.xlu0 %1869
        %v1871 = vlog2.pop %v1860
        %v1872 = vmul.f32 %v1871, 0.6931472
        %v1873 = vlog2.pop %v1862
        %v1874 = vmul.f32 %v1873, 0.6931472
        %v1875 = vlog2.pop %v1864
        %v1876 = vmul.f32 %v1875, 0.6931472
        %v1877 = vlog2.pop %v1866
        %v1878 = vmul.f32 %v1877, 0.6931472
        %v1879 = vlog2.pop %v1868
        %v1880 = vmul.f32 %v1879, 0.6931472
        %v1881 = vlog2.pop %v1870
        %v1882 = vmul.f32 %v1881, 0.6931472
        %v1883 = vsel %vm1227, 0.0, %v1032
        %v1884 = vsel %vm1228, 0.0, %v1036
        %v1885 = vsel %vm1229, 0.0, %v1042
        %v1886 = vsel %vm1230, 0.0, %v1046
        %v1887 = vsel %vm1231, 0.0, %v1052
        %v1888 = vsel %vm1232, 0.0, %v1056
        %1889 = vadd.xlane.f32.xlu0 %v1883
        %v1890 = vpop.xlane.xlu0 %1889
        %1891 = vadd.xlane.f32.xlu0 %v1884
        %v1892 = vpop.xlane.xlu0 %1891
        %1893 = vadd.xlane.f32.xlu0 %v1885
        %v1894 = vpop.xlane.xlu0 %1893
        %1895 = vadd.xlane.f32.xlu0 %v1886
        %v1896 = vpop.xlane.xlu0 %1895
        %1897 = vadd.xlane.f32.xlu0 %v1887
        %v1898 = vpop.xlane.xlu0 %1897
        %1899 = vadd.xlane.f32.xlu0 %v1888
        %v1900 = vpop.xlane.xlu0 %1899
        %v1901 = vrcp.pop %v1890
        %v1902 = vrcp.pop %v1892
        %v1903 = vrcp.pop %v1894
        %v1904 = vrcp.pop %v1896
        %v1905 = vrcp.pop %v1898
        %v1906 = vrcp.pop %v1900
        %v1907 = vmul.f32 %v1883, %v1841
        %v1908 = vmul.f32 %v1884, %v1842
        %v1909 = vmul.f32 %v1885, %v1843
        %v1910 = vmul.f32 %v1886, %v1844
        %v1911 = vmul.f32 %v1887, %v1845
        %v1912 = vmul.f32 %v1888, %v1846
        %1913 = vadd.xlane.f32.xlu0 %v1907
        %v1914 = vpop.xlane.xlu0 %1913
        %1915 = vadd.xlane.f32.xlu0 %v1908
        %v1916 = vpop.xlane.xlu0 %1915
        %1917 = vadd.xlane.f32.xlu0 %v1909
        %v1918 = vpop.xlane.xlu0 %1917
        %1919 = vadd.xlane.f32.xlu0 %v1910
        %v1920 = vpop.xlane.xlu0 %1919
        %1921 = vadd.xlane.f32.xlu0 %v1911
        %v1922 = vpop.xlane.xlu0 %1921
        %1923 = vadd.xlane.f32.xlu0 %v1912
        %v1924 = vpop.xlane.xlu0 %1923
        %v1925 = vmul.f32 %v1901, %v1914
        %v1926 = vmul.f32 %v1902, %v1916
        %v1927 = vmul.f32 %v1903, %v1918
        %v1928 = vmul.f32 %v1904, %v1920
        %v1929 = vmul.f32 %v1905, %v1922
        %v1930 = vmul.f32 %v1906, %v1924
        %v1931 = vsub.f32 %v1925, %v1872
        %v1932 = vsub.f32 %v1926, %v1874
        %v1933 = vsub.f32 %v1927, %v1876
        %v1934 = vsub.f32 %v1928, %v1878
        %v1935 = vsub.f32 %v1929, %v1880
        %v1936 = vsub.f32 %v1930, %v1882
        %1937 = vmax.xlane.f32.xlu0 %v1801
        %v1938 = vpop.xlane.xlu0 %1937
        %1939 = vmax.xlane.f32.xlu0 %v1804
        %v1940 = vpop.xlane.xlu0 %1939
        %1941 = vmax.xlane.f32.xlu0 %v1809
        %v1942 = vpop.xlane.xlu0 %1941
        %1943 = vmax.xlane.f32.xlu0 %v1812
        %v1944 = vpop.xlane.xlu0 %1943
        %1945 = vmax.xlane.f32.xlu0 %v1817
        %v1946 = vpop.xlane.xlu0 %1945
        %1947 = vmax.xlane.f32.xlu0 %v1820
        %v1948 = vpop.xlane.xlu0 %1947
        %v1949 = vsub.f32 %v1801, %v1938
        %v1950 = vsub.f32 %v1804, %v1940
        %v1951 = vsub.f32 %v1809, %v1942
        %v1952 = vsub.f32 %v1812, %v1944
        %v1953 = vsub.f32 %v1817, %v1946
        %v1954 = vsub.f32 %v1820, %v1948
        %v1955 = vmul.f32 %v1949, 1.442695
        %v1956 = vpow.pop %v1955
        %v1957 = vmul.f32 %v1950, 1.442695
        %v1958 = vpow.pop %v1957
        %v1959 = vmul.f32 %v1951, 1.442695
        %v1960 = vpow.pop %v1959
        %v1961 = vmul.f32 %v1952, 1.442695
        %v1962 = vpow.pop %v1961
        %v1963 = vmul.f32 %v1953, 1.442695
        %v1964 = vpow.pop %v1963
        %v1965 = vmul.f32 %v1954, 1.442695
        %v1966 = vpow.pop %v1965
        %1967 = vadd.xlane.f32.xlu0 %v1956
        %v1968 = vpop.xlane.xlu0 %1967
        %1969 = vadd.xlane.f32.xlu0 %v1958
        %v1970 = vpop.xlane.xlu0 %1969
        %1971 = vadd.xlane.f32.xlu0 %v1960
        %v1972 = vpop.xlane.xlu0 %1971
        %1973 = vadd.xlane.f32.xlu0 %v1962
        %v1974 = vpop.xlane.xlu0 %1973
        %1975 = vadd.xlane.f32.xlu0 %v1964
        %v1976 = vpop.xlane.xlu0 %1975
        %1977 = vadd.xlane.f32.xlu0 %v1966
        %v1978 = vpop.xlane.xlu0 %1977
        %v1979 = vlog2.pop %v1968
        %v1980 = vmul.f32 %v1979, 0.6931472
        %v1981 = vlog2.pop %v1970
        %v1982 = vmul.f32 %v1981, 0.6931472
        %v1983 = vlog2.pop %v1972
        %v1984 = vmul.f32 %v1983, 0.6931472
        %v1985 = vlog2.pop %v1974
        %v1986 = vmul.f32 %v1985, 0.6931472
        %v1987 = vlog2.pop %v1976
        %v1988 = vmul.f32 %v1987, 0.6931472
        %v1989 = vlog2.pop %v1978
        %v1990 = vmul.f32 %v1989, 0.6931472
        %1991 = vset.pattern.permute.xlu0 1
        %1992 = vperm.xlu0 %1991, %v551
        %v1993 = vpop.permute.xlu0 %1992
        %1994 = vset.pattern.permute.xlu0 1
        %1995 = vperm.xlu0 %1994, %v552
        %v1996 = vpop.permute.xlu0 %1995
        %1997 = vset.pattern.permute.xlu0 1
        %1998 = vperm.xlu0 %1997, %v553
        %v1999 = vpop.permute.xlu0 %1998
        %2000 = vset.pattern.permute.xlu0 1
        %2001 = vperm.xlu0 %2000, %v554
        %v2002 = vpop.permute.xlu0 %2001
        %2003 = vset.pattern.permute.xlu0 1
        %2004 = vperm.xlu0 %2003, %v555
        %v2005 = vpop.permute.xlu0 %2004
        %2006 = vset.pattern.permute.xlu0 1
        %2007 = vperm.xlu0 %2006, %v556
        %v2008 = vpop.permute.xlu0 %2007
        %vm2009 = vcmp.eq.s32.totalorder %v1993, %v558
        %vm2010 = vcmp.eq.s32.totalorder %v1996, %v558
        %vm2011 = vcmp.eq.s32.totalorder %v1999, %v558
        %vm2012 = vcmp.eq.s32.totalorder %v2002, %v558
        %vm2013 = vcmp.eq.s32.totalorder %v2005, %v558
        %vm2014 = vcmp.eq.s32.totalorder %v2008, %v558
        %v2015 = vsel %vm2009, %v1949, 0.0
        %v2016 = vsel %vm2010, %v1950, 0.0
        %v2017 = vsel %vm2011, %v1951, 0.0
        %v2018 = vsel %vm2012, %v1952, 0.0
        %v2019 = vsel %vm2013, %v1953, 0.0
        %v2020 = vsel %vm2014, %v1954, 0.0
        %2021 = vadd.xlane.f32.xlu0 %v2015
        %v2022 = vpop.xlane.xlu0 %2021
        %2023 = vadd.xlane.f32.xlu0 %v2016
        %v2024 = vpop.xlane.xlu0 %2023
        %2025 = vadd.xlane.f32.xlu0 %v2017
        %v2026 = vpop.xlane.xlu0 %2025
        %2027 = vadd.xlane.f32.xlu0 %v2018
        %v2028 = vpop.xlane.xlu0 %2027
        %2029 = vadd.xlane.f32.xlu0 %v2019
        %v2030 = vpop.xlane.xlu0 %2029
        %2031 = vadd.xlane.f32.xlu0 %v2020
        %v2032 = vpop.xlane.xlu0 %2031
        %v2033 = vsub.f32 %v2022, %v1980
        %v2034 = vsub.f32 %v2024, %v1982
        %v2035 = vsub.f32 %v2026, %v1984
        %v2036 = vsub.f32 %v2028, %v1986
        %v2037 = vsub.f32 %v2030, %v1988
        %v2038 = vsub.f32 %v2032, %v1990
        %vm2039 = vcmp.eq.s32.totalorder %v558, 0
        %vm2040 = vcmp.eq.s32.totalorder %v558, 1
        %v2041 = vsel %vm2040, %v2033, 0.0
        %v2042 = vsel %vm2040, %v2034, 0.0
        %v2043 = vsel %vm2040, %v2035, 0.0
        %v2044 = vsel %vm2040, %v2036, 0.0
        %v2045 = vsel %vm2040, %v2037, 0.0
        %v2046 = vsel %vm2040, %v2038, 0.0
        %v2047 = vsel %vm2039, %v1931, %v2041
        %v2048 = vsel %vm2039, %v1932, %v2042
        %v2049 = vsel %vm2039, %v1933, %v2043
        %v2050 = vsel %vm2039, %v1934, %v2044
        %v2051 = vsel %vm2039, %v1935, %v2045
        %v2052 = vsel %vm2039, %v1936, %v2046
        %v2053 = vmul.u32 %v933, 16
        %vm2054 = vcmp.ge.s32.totalorder %v558, %v2053
        %v2055 = vadd.s32 %v2053, 16
        %vm2056 = vcmp.lt.s32.totalorder %v558, %v2055
        %vm2057 = vmand %vm2054, %vm2056
        %v2058 = vsel %vm2057, 1, 0
        %v2059 = vcvt.s32.f32 %v2058
        %v2061 = vsel %vm1085, %v2059, 0
        %2063 = vmatprep.subr.mxu0 0.0
        %2064 = vmatpush1.msra.mxu0 %v2047
        %2065 = vmatprep.subr.mxu0 0.0
        %2066 = vmatpush1.msra.mxu0 %v2048
        %2067 = vmatprep.subr.mxu0 0.0
        %2068 = vmatpush1.msra.mxu0 %v2049
        %2069 = vmatprep.subr.mxu0 0.0
        %2070 = vmatpush1.msra.mxu0 %v2050
        %2071 = vmatprep.subr.mxu0 0.0
        %2072 = vmatpush1.msra.mxu0 %v2051
        %2073 = vmatprep.subr.mxu0 0.0
        %2074 = vmatpush1.msra.mxu0 %v2052
        %2075 = vmatprep.subr.mxu0 0.0
        %2076 = vmatpush1.msra.mxu0 0.0
        %2077 = vmatprep.subr.mxu0 0.0
        %2078 = vmatpush1.msra.mxu0 0.0
        %2079 = vmatprep.subr.mxu0 0.0
        %2080 = vmatpush1.msra.mxu0 0.0
        %2081 = vmatprep.subr.mxu0 0.0
        %2082 = vmatpush1.msra.mxu0 0.0
        %2083 = vmatprep.subr.mxu0 0.0
        %2084 = vmatpush1.msra.mxu0 0.0
        %2085 = vmatprep.subr.mxu0 0.0
        %2086 = vmatpush1.msra.mxu0 0.0
        %2087 = vmatprep.subr.mxu0 0.0
        %2088 = vmatpush1.msra.mxu0 0.0
        %2089 = vmatprep.subr.mxu0 0.0
        %2090 = vmatpush1.msra.mxu0 0.0
        %2091 = vmatprep.subr.mxu0 0.0
        %2092 = vmatpush1.msra.mxu0 0.0
        %2093 = vmatprep.subr.mxu0 0.0
        %2094 = vmatpush1.msra.mxu0 0.0
        %2095 = vmatprep.subr.mxu0 0.0
        %2096 = vmatpush1.msra.mxu0 0.0
        %2097 = vmatprep.subr.mxu0 0.0
        %2098 = vmatpush1.msra.mxu0 0.0
        %2099 = vmatprep.subr.mxu0 0.0
        %2100 = vmatpush1.msra.mxu0 0.0
        %2101 = vmatprep.subr.mxu0 0.0
        %2102 = vmatpush1.msra.mxu0 0.0
        %2103 = vmatprep.subr.mxu0 0.0
        %2104 = vmatpush1.msra.mxu0 0.0
        %2105 = vmatprep.subr.mxu0 0.0
        %2106 = vmatpush1.msra.mxu0 0.0
        %2107 = vmatprep.subr.mxu0 0.0
        %2108 = vmatpush1.msra.mxu0 0.0
        %2109 = vmatprep.subr.mxu0 0.0
        %2110 = vmatpush1.msra.mxu0 0.0
        %2111 = vmatprep.subr.mxu0 0.0
        %2112 = vmatpush1.msra.mxu0 0.0
        %2113 = vmatprep.subr.mxu0 0.0
        %2114 = vmatpush1.msra.mxu0 0.0
        %2115 = vmatprep.subr.mxu0 0.0
        %2116 = vmatpush1.msra.mxu0 0.0
        %2117 = vmatprep.subr.mxu0 0.0
        %2118 = vmatpush1.msra.mxu0 0.0
        %2119 = vmatprep.subr.mxu0 0.0
        %2120 = vmatpush1.msra.mxu0 0.0
        %2121 = vmatprep.subr.mxu0 0.0
        %2122 = vmatpush1.msra.mxu0 0.0
        %2123 = vmatprep.subr.mxu0 0.0
        %2124 = vmatpush1.msra.mxu0 0.0
        %2125 = vmatprep.subr.mxu0 0.0
        %2126 = vmatpush1.msra.mxu0 0.0
        %2127 = vmatprep.mubr.f32.mxu0 0.0
        %2128 = vmatmul.mubr.f32.gmra.mrb[0].mxu0 %v2061
        %v2129 = vpop.f32.mrb[0].mxu0
        %v2130 = vadd.f32 0.0, %v2129
        %v2131 = vpop.f32.mrb[0].mxu0
        %2132 = vdwg.mxu0
        %v2133 = vmul.f32 %v2130, 0.5
        %2134 = vst [vmem:[%s549] sm:$0x7] %v2133
        %p2135 = scmp.lt.s32.totalorder %s30, 1
        %s2136 = scalar_select %p2135, %s30, 1
        %s2137 = smul.addr %s2136, 4
        %s2138 = scalar_lea.vmem %s13, %s2137
        // Predicated region
        $region97: #{tpu_custom_call.1} parent=71 // pred_check
          %p2139 = pneg %p331
        $region98: #{tpu_custom_call.1} parent=71 // pred_check_branch
          %2141 = sbr.rel (%p2139) target = $region100
        $region99: #{tpu_custom_call.1} parent=71 // pred_region
          _
        $region100: #{tpu_custom_call.1} parent=71 // pred_fallthru
          _
      $region72: #{tpu_custom_call.1} parent=5 // pred_fallthru
        _
      %p2142 = scmp.le.s32.totalorder 2, %s25
      // Predicated region
      $region101: #{tpu_custom_call.1} parent=5 // pred_check
        %p2143 = pneg %p2142
      $region102: #{tpu_custom_call.1} parent=5 // pred_check_branch
        %2145 = sbr.rel (%p2143) target = $region104
      $region103: #{tpu_custom_call.1} parent=5 // pred_region
        %s2146 = ssub.s32 %s25, 2
        // Predicated region
        $region105: #{tpu_custom_call.1} parent=103 // pred_check
          %p2147 = pneg %p337
        $region106: #{tpu_custom_call.1} parent=103 // pred_check_branch
          %2149 = sbr.rel (%p2147) target = $region108
        $region107: #{tpu_custom_call.1} parent=103 // pred_region
          %p2150 = scmp.lt.s32.totalorder %s31, 1
          %s2151 = scalar_select %p2150, %s31, 1
          %s2152 = smul.addr %s2151, 4
          %s2153 = scalar_lea.vmem %s13, %s2152
        $region108: #{tpu_custom_call.1} parent=103 // pred_fallthru
          _
      $region104: #{tpu_custom_call.1} parent=5 // pred_fallthru
        _
    $region6: #{tpu_custom_call.1} parent=1 // loop_footer
      %s29 = sadd.s32 1, %s25
    $region7: #{tpu_custom_call.1} parent=1 // loop_footer_branch
      %24 = sbr.rel target = $region3
    $region8: #{tpu_custom_call.1} parent=1 // loop_exit
      _
    %2154 = vsyncpa [#allocation3], 1
    %s2155 = scalar_lea.sflag [#allocation3], 1
    %2156 = vsyncpa %s2155, 1
    %2157 = vsyncpa [#allocation5], 1
    %2158 = vsyncpa [#allocation8], 1
    %2159 = vsyncpa [#allocation11], 1

</llo_original>
